<compile_context>
chip_gen: v7x
topology: tpu7x:2x2x1
jax: 0.10.0
libtpu: 0.0.40
codegen_flags: <defaults>
</compile_context>

<pallas_src>
import jax
import jax.numpy as jnp
from jax.experimental import pallas as pl
from jax.experimental.pallas import tpu as pltpu


def decoder_step_kernel(
    emb_ref,    # (B, E)          f32   embedded token (dropout = identity, eval)
    h_ref,      # (B, 2H)         f32   flattened decoder hidden
    c_ref,      # (B, 2H)         f32
    enc_ref,    # (B, S, 2Eh)     bf16  encoder outputs (pre-cast in wrapper)
    Wa_ref,     # (2Eh, A)        bf16  attention.W (pre-transposed)
    Ua_ref,     # (2H, A)         bf16  attention.U (pre-transposed)
    va_ref,     # (A, 1)          f32   attention.v (as a column)
    Wall_ref,   # (E+2Eh+2H, 8H)  bf16  fused [lstm.weight_ih ; lstm.weight_hh].T
    b_ref,      # (1, 8H)         f32   b_ih + b_hh
    Wfc_ref,    # (2H, TILE_V)    bf16  fc.weight.T  (contiguous vocab tile)
    bfc_ref,    # (1, TILE_V)     f32   fc.bias      (vocab tile)
    out_ref,    # (B, TILE_V)     f32
    h_out_ref,  # (B, 2H)         f32
    c_out_ref,  # (B, 2H)         f32
    attn_ref,   # (B, S)          f32
    h_scratch,  # VMEM (B, 2H)    bf16  new hidden, reused across vocab tiles
):
    # Attention + LSTM run once (first vocab tile); result lives in VMEM scratch
    # and in the resident (constant-index) output blocks.
    @pl.when(pl.program_id(0) == 0)
    def _attention_and_lstm():
        emb = emb_ref[...]
        h = h_ref[...]
        c = c_ref[...]
        enc = enc_ref[...]                       # already bf16
        B, S, De = enc.shape
        h_bf = h.astype(jnp.bfloat16)

        # ---- Bahdanau attention ----
        # W(encoder_outputs): flatten (B,S) so it is ONE MXU matmul, not B of them.
        temp1 = jnp.dot(enc.reshape(B * S, De), Wa_ref[...],
                        preferred_element_type=jnp.float32).reshape(B, S, -1)
        # U(decoder_hidden), broadcast over seq.
        temp2 = jnp.dot(h_bf, Ua_ref[...], preferred_element_type=jnp.float32)
        t = jnp.tanh(temp1 + temp2[:, None, :])                 # (B, S, A) f32
        A = t.shape[-1]
        # score = v(tanh(...)) as an MXU matmul (offloads the VALU in this phase)
        score = jnp.dot(t.reshape(B * S, A), va_ref[...],
                        preferred_element_type=jnp.float32).reshape(B, S)
        # softmax over seq (f32), reciprocal on the EUP
        m = jnp.max(score, axis=-1, keepdims=True)
        e = jnp.exp(score - m)
        attn = e * pl.reciprocal(jnp.sum(e, axis=-1, keepdims=True), approx=True)
        attn_ref[...] = attn
        # context = bmm(attn.unsqueeze(1), enc): batched MXU matmul, (B, 2Eh)
        context = jnp.einsum(
            'bqs,bse->bqe', attn[:, None, :].astype(jnp.bfloat16), enc,
            preferred_element_type=jnp.float32)[:, 0, :]

        # ---- single LSTM step (hidden 2H), fused gate matmul, order i,f,g,o ----
        # NOTE: for production configs keep E, 2Eh, 2H multiples of 128 so the
        # concat boundaries and gate slices are lane-aligned.
        x = jnp.concatenate(
            [emb.astype(jnp.bfloat16), context.astype(jnp.bfloat16), h_bf],
            axis=-1)                                            # (B, E+2Eh+2H)
        gates = (jnp.dot(x, Wall_ref[...], preferred_element_type=jnp.float32)
                 + b_ref[...])                                  # (B, 8H) f32
        H2 = h.shape[-1]
        i_g = jax.nn.sigmoid(gates[:, 0 * H2:1 * H2])
        f_g = jax.nn.sigmoid(gates[:, 1 * H2:2 * H2])
        g_g = jnp.tanh(gates[:, 2 * H2:3 * H2])
        o_g = jax.nn.sigmoid(gates[:, 3 * H2:4 * H2])
        c_new = f_g * c + i_g * g_g
        h_new = o_g * jnp.tanh(c_new)
        c_out_ref[...] = c_new
        h_out_ref[...] = h_new
        h_scratch[...] = h_new.astype(jnp.bfloat16)   # bf16 once, reused per tile

    # ---- vocab projection: one contiguous (2H, TILE_V) weight tile per step ----
    out_ref[...] = (jnp.dot(h_scratch[...], Wfc_ref[...],
                            preferred_element_type=jnp.float32)
                    + bfc_ref[...])


def _round_up(x, m):
    return ((x + m - 1) // m) * m


def _vmem_buf_bytes(shape, dtype):
    """Rough per-buffer VMEM footprint (last two dims padded to (8,128))."""
    itemsize = jnp.dtype(dtype).itemsize
    if len(shape) < 2:
        return _round_up(int(shape[0]) * itemsize, 4096)
    lead = 1
    for d in shape[:-2]:
        lead *= int(d)
    return (lead * _round_up(int(shape[-2]), 8)
            * _round_up(int(shape[-1]), 128) * itemsize)


def decoder_step(emb, h_flat, c_flat, enc_bf16, kp):
    B, E = emb.shape
    S, De = enc_bf16.shape[1], enc_bf16.shape[2]
    H2 = h_flat.shape[1]
    A = kp['Wa'].shape[1]
    Din, G = kp['W_all'].shape
    num_tiles, _, tile_v = kp['Wfc'].shape
    Vp = num_tiles * tile_v
    wfc_buf = kp['wfc_buffers']

    # ---- VMEM budget (derived, not a flat constant) ----
    footprint = (
        _vmem_buf_bytes((B, E), jnp.float32)
        + 2 * _vmem_buf_bytes((B, H2), jnp.float32)            # h, c in
        + _vmem_buf_bytes((B, S, De), jnp.bfloat16)            # enc (bf16)
        + _vmem_buf_bytes((De, A), jnp.bfloat16)
        + _vmem_buf_bytes((H2, A), jnp.bfloat16)
        + _vmem_buf_bytes((A, 1), jnp.float32)
        + _vmem_buf_bytes((Din, G), jnp.bfloat16)
        + _vmem_buf_bytes((1, G), jnp.float32)
        + wfc_buf * _vmem_buf_bytes((H2, tile_v), jnp.bfloat16)   # Wfc stream
        + wfc_buf * _vmem_buf_bytes((1, tile_v), jnp.float32)     # bfc stream
        + 2 * _vmem_buf_bytes((B, tile_v), jnp.float32)           # out tiles
        + 4 * _vmem_buf_bytes((B, H2), jnp.float32)               # h_out, c_out
        + 2 * _vmem_buf_bytes((B, S), jnp.float32)                # attn
        + _vmem_buf_bytes((B, H2), jnp.bfloat16)                  # scratch
    )
    # 1.5x headroom; floor 32 MiB for compiler internal scratch; cap 64 MiB so
    # the same budget also fits v7x's physical VMEM.
    vmem_limit = int(min(max(int(footprint * 1.5) + (4 << 20), 32 << 20),
                         64 << 20))

    flops = 2 * B * (S * De * A + H2 * A + S * A + S * De + Din * G + H2 * Vp)
    transcendentals = B * (S * A + S + 5 * H2)
    bytes_accessed = (
        4 * (B * E + 2 * B * H2) + 2 * B * S * De
        + 2 * (De * A + H2 * A + Din * G) + 4 * (A + G)
        + 2 * H2 * Vp + 4 * Vp
        + 4 * (B * Vp + 2 * B * H2 + B * S))

    const2 = lambda j: (0, 0)
    single = pl.Buffered(1)        # constant-index inputs: never re-fetched
    deep = pl.Buffered(wfc_buf)    # streamed vocab tiles: prefetch behind tile 0

    return pl.pallas_call(
        decoder_step_kernel,
        grid=(num_tiles,),
        out_shape=(
            jax.ShapeDtypeStruct((B, Vp), jnp.float32),
            jax.ShapeDtypeStruct((B, H2), jnp.float32),
            jax.ShapeDtypeStruct((B, H2), jnp.float32),
            jax.ShapeDtypeStruct((B, S), jnp.float32),
        ),
        in_specs=[
            pl.BlockSpec((B, E), const2, pipeline_mode=single),
            pl.BlockSpec((B, H2), const2, pipeline_mode=single),
            pl.BlockSpec((B, H2), const2, pipeline_mode=single),
            pl.BlockSpec((B, S, De), lambda j: (0, 0, 0), pipeline_mode=single),
            pl.BlockSpec((De, A), const2, pipeline_mode=single),
            pl.BlockSpec((H2, A), const2, pipeline_mode=single),
            pl.BlockSpec((A, 1), const2, pipeline_mode=single),
            pl.BlockSpec((Din, G), const2, pipeline_mode=single),
            pl.BlockSpec((1, G), const2, pipeline_mode=single),
            # Pre-tiled contiguous Wfc slab: one linear DMA per vocab tile.
            pl.BlockSpec((None, H2, tile_v), lambda j: (j, 0, 0),
                         pipeline_mode=deep),
            pl.BlockSpec((1, tile_v), lambda j: (0, j), pipeline_mode=deep),
        ],
        out_specs=(
            pl.BlockSpec((B, tile_v), lambda j: (0, j)),
            pl.BlockSpec((B, H2), const2),
            pl.BlockSpec((B, H2), const2),
            pl.BlockSpec((B, S), const2),
        ),
        scratch_shapes=[pltpu.VMEM((B, H2), jnp.bfloat16)],
        compiler_params=pltpu.CompilerParams(
            # The vocab axis reuses LSTM state computed at j==0 from VMEM
            # scratch, so it must stay sequential ("arbitrary").
            # TODO(synk): v7x 2-TC split of the vocab axis (recompute the
            # LSTM state per core, or a separate projection pallas_call).
            dimension_semantics=("arbitrary",),
            vmem_limit_bytes=vmem_limit,
        ),
        cost_estimate=pl.CostEstimate(
            flops=int(flops),
            transcendentals=int(transcendentals),
            bytes_accessed=int(bytes_accessed)),
    )(emb, h_flat, c_flat, enc_bf16,
      kp['Wa'], kp['Ua'], kp['va'], kp['W_all'], kp['b'], kp['Wfc'], kp['bfc'])


def decoder_with_bahdanau_forward(kp, input_token, hidden_state, cell_state,
                                  encoder_outputs):
    """Matches DecoderWithBahdanauAttention.forward (eval mode)."""
    # glue: embedding lookup; dropout is identity at inference.
    # TODO(synk): training-mode dropout (p=0.1) not implemented (inference semantics).
    emb = jnp.take(kp['embedding'], input_token, axis=0)               # (B, E)
    B = emb.shape[0]
    # glue: (2, B, H) -> transpose(0,1) -> reshape(B, 2H), same as the torch code.
    h_flat = jnp.transpose(hidden_state, (1, 0, 2)).reshape(B, -1)
    c_flat = jnp.transpose(cell_state, (1, 0, 2)).reshape(B, -1)
    # enc is the largest activation: cast once here, halve its HBM/VMEM cost.
    enc_bf16 = encoder_outputs.astype(jnp.bfloat16)
    out, h_new, c_new, attn = decoder_step(emb, h_flat, c_flat, enc_bf16, kp)
    return out[:, :kp['vocab_size']], h_new[None], c_new[None], attn


def init_params(key, hidden_dim, vocab_size, embedding_dim, encoder_hidden_dim):
    """Deterministic synthetic f32 parameters matching the module's shapes
    (pre-transposed for y = x @ W layouts)."""
    H, V, E, Eh = hidden_dim, vocab_size, embedding_dim, encoder_hidden_dim
    A = hidden_dim                 # attention_size
    H2 = 2 * H                     # LSTM hidden size
    in_dim = E + 2 * Eh            # LSTM input size
    ks = jax.random.split(key, 10)
    s = 0.1
    params = {
        'embedding': jax.random.normal(ks[0], (V, E), jnp.float32) * s,
        'Wa':        jax.random.normal(ks[1], (2 * Eh, A), jnp.float32) * s,
        'Ua':        jax.random.normal(ks[2], (H2, A), jnp.float32) * s,
        'va':        jax.random.normal(ks[3], (1, A), jnp.float32) * s,
        'Whh':       jax.random.normal(ks[5], (H2, 4 * H2), jnp.float32) * s,
        'b':         jax.random.normal(ks[6], (1, 4 * H2), jnp.float32) * s,
        'Wfc':       jax.random.normal(ks[7], (H2, V), jnp.float32) * s,
        'bfc':       jax.random.normal(ks[8], (1, V), jnp.float32) * s,
    }
    Wih = jax.random.normal(ks[4], (in_dim, 4 * H2), jnp.float32) * s
    params['Wih_e'] = Wih[:E]          # embedding part of lstm input
    params['Wih_c'] = Wih[E:]          # context-vector part of lstm input
    return params


def _pick_tile_v(V):
    """Largest lane-aligned vocab tile (<=2048) that still gives >=2 grid steps."""
    for cand in (2048, 1024, 512, 256):
        if V >= 2 * cand:
            return cand
    return 128


def prepare_kernel_params(params):
    """bf16 matmul weights, fused gate weight, contiguous pre-tiled Wfc."""
    H2, V = params['Wfc'].shape
    A = params['Wa'].shape[1]
    tile_v = _pick_tile_v(V)
    V_pad = ((V + tile_v - 1) // tile_v) * tile_v
    num_tiles = V_pad // tile_v
    Wfc, bfc = params['Wfc'], params['bfc']
    if V_pad != V:
        Wfc = jnp.pad(Wfc, ((0, 0), (0, V_pad - V)))
        bfc = jnp.pad(bfc, ((0, 0), (0, V_pad - V)))
    # Pre-tile Wfc into a contiguous (num_tiles, 2H, tile_v) slab: each vocab
    # tile is one linear HBM->VMEM DMA instead of 2H strided segments.
    Wfc_tiled = jnp.transpose(Wfc.reshape(H2, num_tiles, tile_v), (1, 0, 2))
    return {
        'embedding': params['embedding'],
        'Wa': params['Wa'].astype(jnp.bfloat16),
        'Ua': params['Ua'].astype(jnp.bfloat16),
        'va': params['va'].reshape(A, 1),                   # column for MXU score
        'W_all': jnp.concatenate(
            [params['Wih_e'], params['Wih_c'], params['Whh']],
            axis=0).astype(jnp.bfloat16),
        'b': params['b'],
        'Wfc': Wfc_tiled.astype(jnp.bfloat16),
        'bfc': bfc,
        'vocab_size': V,
        'wfc_buffers': max(2, min(4, num_tiles)),
    }


def reference_forward(params, input_token, hidden_state, cell_state, encoder_outputs):
    """Pure-JAX f32 reference mirroring the PyTorch forward, for verification."""
    emb = params['embedding'][input_token]                              # (B, E)
    B = emb.shape[0]
    h_flat = jnp.transpose(hidden_state, (1, 0, 2)).reshape(B, -1)      # (B, 2H)
    c_flat = jnp.transpose(cell_state, (1, 0, 2)).reshape(B, -1)
    enc = encoder_outputs
    temp1 = jnp.einsum('bse,ea->bsa', enc, params['Wa'])
    temp2 = (h_flat @ params['Ua'])[:, None, :]
    score = jnp.einsum('bsa,a->bs', jnp.tanh(temp1 + temp2), params['va'][0])
    attn = jax.nn.softmax(score, axis=-1)
    context = jnp.einsum('bs,bse->be', attn, enc)
    x = jnp.concatenate([emb, context], axis=-1)
    Wih = jnp.concatenate([params['Wih_e'], params['Wih_c']], axis=0)
    gates = x @ Wih + h_flat @ params['Whh'] + params['b']
    H2 = h_flat.shape[1]
    i_g = jax.nn.sigmoid(gates[:, :H2])
    f_g = jax.nn.sigmoid(gates[:, H2:2 * H2])
    g_g = jnp.tanh(gates[:, 2 * H2:3 * H2])
    o_g = jax.nn.sigmoid(gates[:, 3 * H2:])
    c_new = f_g * c_flat + i_g * g_g
    h_new = o_g * jnp.tanh(c_new)
    out = h_new @ params['Wfc'] + params['bfc']
    return out, h_new[None], c_new[None], attn


if __name__ == "__main__":
    # Small shapes consistent with the module (B >= 8 to fill vreg sublanes,
    # V big enough that the vocab grid has >1 step and exercises streaming).
    hidden_dim = 32
    vocab_size = 256
    embedding_dim = 16
    encoder_hidden_dim = 32
    batch = 8
    seq_len = 16

    key = jax.random.PRNGKey(0)
    k_par, k_tok, k_h, k_c, k_enc = jax.random.split(key, 5)

    params = init_params(k_par, hidden_dim, vocab_size, embedding_dim,
                         encoder_hidden_dim)
    kparams = prepare_kernel_params(params)

    input_token = jax.random.randint(k_tok, (batch,), 0, vocab_size, dtype=jnp.int32)
    hidden_state = jax.random.normal(k_h, (2, batch, hidden_dim), jnp.float32)
    cell_state = jax.random.normal(k_c, (2, batch, hidden_dim), jnp.float32)
    encoder_outputs = jax.random.normal(
        k_enc, (batch, seq_len, 2 * encoder_hidden_dim), jnp.float32)

    out, h_new, c_new, attn = decoder_with_bahdanau_forward(
        kparams, input_token, hidden_state, cell_state, encoder_outputs)
    jax.block_until_ready((out, h_new, c_new, attn))

    ref_out, ref_h, ref_c, ref_attn = reference_forward(
        params, input_token, hidden_state, cell_state, encoder_outputs)

    assert out.shape == (batch, vocab_size)
    assert h_new.shape == (1, batch, 2 * hidden_dim)
    assert c_new.shape == (1, batch, 2 * hidden_dim)
    assert attn.shape == (batch, seq_len)
    # bf16 matmul weights / bf16 enc in the kernel vs. f32 reference -> loosened tolerances.
    assert jnp.allclose(out, ref_out, atol=5e-2, rtol=5e-2)
    assert jnp.allclose(h_new, ref_h, atol=5e-2, rtol=5e-2)
    assert jnp.allclose(c_new, ref_c, atol=5e-2, rtol=5e-2)
    assert jnp.allclose(attn, ref_attn, atol=2e-2, rtol=2e-2)

    print("KERNEL_OK")
</pallas_src>

<mosaic_0001>
module attributes {stable_mosaic.version = 11 : i64} {
  func.func @decoder_step_kernel(%arg0: i32, %arg1: memref<8x16xf32, #tpu.memory_space<vmem>>, %arg2: memref<8x64xf32, #tpu.memory_space<vmem>>, %arg3: memref<8x64xf32, #tpu.memory_space<vmem>>, %arg4: memref<8x16x64xbf16, #tpu.memory_space<vmem>>, %arg5: memref<64x32xbf16, #tpu.memory_space<vmem>>, %arg6: memref<64x32xbf16, #tpu.memory_space<vmem>>, %arg7: memref<32x1xf32, #tpu.memory_space<vmem>>, %arg8: memref<144x256xbf16, #tpu.memory_space<vmem>>, %arg9: memref<1x256xf32, #tpu.memory_space<vmem>>, %arg10: memref<1x64x128xbf16, #tpu.memory_space<vmem>>, %arg11: memref<1x128xf32, #tpu.memory_space<vmem>>, %arg12: memref<8x128xf32, #tpu.memory_space<vmem>>, %arg13: memref<8x64xf32, #tpu.memory_space<vmem>>, %arg14: memref<8x64xf32, #tpu.memory_space<vmem>>, %arg15: memref<8x16xf32, #tpu.memory_space<vmem>>, %arg16: memref<8x64xbf16, #tpu.memory_space<vmem>>) attributes {dimension_semantics = [#tpu.dimension_semantics<arbitrary>], iteration_bounds = array<i64: 2>, scalar_prefetch = 0 : i64, scratch_operands = 1 : i64, tpu.core_type = #tpu.core_type<tc>, window_params = [{pipeline_mode = #tpu.pipeline_mode<synchronous>, transform_indices = @transform_0, window_bounds = array<i64: 8, 16>}, {pipeline_mode = #tpu.pipeline_mode<synchronous>, transform_indices = @transform_1, window_bounds = array<i64: 8, 64>}, {pipeline_mode = #tpu.pipeline_mode<synchronous>, transform_indices = @transform_2, window_bounds = array<i64: 8, 64>}, {pipeline_mode = #tpu.pipeline_mode<synchronous>, transform_indices = @transform_3, window_bounds = array<i64: 8, 16, 64>}, {pipeline_mode = #tpu.pipeline_mode<synchronous>, transform_indices = @transform_4, window_bounds = array<i64: 64, 32>}, {pipeline_mode = #tpu.pipeline_mode<synchronous>, transform_indices = @transform_5, window_bounds = array<i64: 64, 32>}, {pipeline_mode = #tpu.pipeline_mode<synchronous>, transform_indices = @transform_6, window_bounds = array<i64: 32, 1>}, {pipeline_mode = #tpu.pipeline_mode<synchronous>, transform_indices = @transform_7, window_bounds = array<i64: 144, 256>}, {pipeline_mode = #tpu.pipeline_mode<synchronous>, transform_indices = @transform_8, window_bounds = array<i64: 1, 256>}, {pipeline_mode = #tpu.pipeline_mode<double_buffered>, transform_indices = @transform_9, window_bounds = array<i64: 1, 64, 128>}, {pipeline_mode = #tpu.pipeline_mode<double_buffered>, transform_indices = @transform_10, window_bounds = array<i64: 1, 128>}, {transform_indices = @transform_11, window_bounds = array<i64: 8, 128>}, {pipeline_mode = #tpu.pipeline_mode<synchronous>, transform_indices = @transform_12, window_bounds = array<i64: 8, 64>}, {pipeline_mode = #tpu.pipeline_mode<synchronous>, transform_indices = @transform_13, window_bounds = array<i64: 8, 64>}, {pipeline_mode = #tpu.pipeline_mode<synchronous>, transform_indices = @transform_14, window_bounds = array<i64: 8, 16>}]} {
    %c0_i32 = arith.constant 0 : i32
    %0 = arith.cmpi eq, %arg0, %c0_i32 : i32
    %1 = arith.extui %0 : i1 to i32
    %c0_i32_0 = arith.constant 0 : i32
    %2 = arith.cmpi ne, %1, %c0_i32_0 : i32
    scf.if %2 {
      %c0_9 = arith.constant 0 : index
      %c0_10 = arith.constant 0 : index
      %11 = vector.load %arg1[%c0_9, %c0_10] : memref<8x16xf32, #tpu.memory_space<vmem>>, vector<8x16xf32>
      %c0_11 = arith.constant 0 : index
      %c0_12 = arith.constant 0 : index
      %12 = vector.load %arg2[%c0_11, %c0_12] : memref<8x64xf32, #tpu.memory_space<vmem>>, vector<8x64xf32>
      %c0_13 = arith.constant 0 : index
      %c0_14 = arith.constant 0 : index
      %13 = vector.load %arg3[%c0_13, %c0_14] : memref<8x64xf32, #tpu.memory_space<vmem>>, vector<8x64xf32>
      %c0_15 = arith.constant 0 : index
      %c0_16 = arith.constant 0 : index
      %c0_17 = arith.constant 0 : index
      %14 = vector.load %arg4[%c0_15, %c0_16, %c0_17] : memref<8x16x64xbf16, #tpu.memory_space<vmem>>, vector<8x16x64xbf16>
      %15 = arith.truncf %12 : vector<8x64xf32> to vector<8x64xbf16>
      %16 = vector.shape_cast %14 : vector<8x16x64xbf16> to vector<128x64xbf16>
      %c0_18 = arith.constant 0 : index
      %c0_19 = arith.constant 0 : index
      %17 = vector.load %arg5[%c0_18, %c0_19] : memref<64x32xbf16, #tpu.memory_space<vmem>>, vector<64x32xbf16>
      %cst_20 = arith.constant dense<0.000000e+00> : vector<128x32xf32>
      %18 = tpu.matmul %16, %17, %cst_20 {dimension_numbers = #tpu.dot_dimension_numbers<[1], [0], [0], [1], [0, 0, 1, 1], [], []>} : vector<128x64xbf16>, vector<64x32xbf16>, vector<128x32xf32> -> vector<128x32xf32>
      %19 = vector.shape_cast %18 : vector<128x32xf32> to vector<8x16x32xf32>
      %c0_21 = arith.constant 0 : index
      %c0_22 = arith.constant 0 : index
      %20 = vector.load %arg6[%c0_21, %c0_22] : memref<64x32xbf16, #tpu.memory_space<vmem>>, vector<64x32xbf16>
      %cst_23 = arith.constant dense<0.000000e+00> : vector<8x32xf32>
      %21 = tpu.matmul %15, %20, %cst_23 {dimension_numbers = #tpu.dot_dimension_numbers<[1], [0], [0], [1], [0, 0, 1, 1], [], []>} : vector<8x64xbf16>, vector<64x32xbf16>, vector<8x32xf32> -> vector<8x32xf32>
      %22 = vector.shape_cast %21 : vector<8x32xf32> to vector<8x1x32xf32>
      %23 = vector.broadcast %22 : vector<8x1x32xf32> to vector<8x16x32xf32>
      %24 = arith.addf %19, %23 : vector<8x16x32xf32>
      %25 = math.tanh %24 : vector<8x16x32xf32>
      %26 = vector.shape_cast %25 : vector<8x16x32xf32> to vector<128x32xf32>
      %c0_24 = arith.constant 0 : index
      %c0_25 = arith.constant 0 : index
      %27 = vector.load %arg7[%c0_24, %c0_25] : memref<32x1xf32, #tpu.memory_space<vmem>>, vector<32x1xf32>
      %cst_26 = arith.constant dense<0.000000e+00> : vector<128x1xf32>
      %28 = tpu.matmul %26, %27, %cst_26 {dimension_numbers = #tpu.dot_dimension_numbers<[1], [0], [0], [1], [0, 0, 1, 1], [], []>} : vector<128x32xf32>, vector<32x1xf32>, vector<128x1xf32> -> vector<128x1xf32>
      %29 = vector.shape_cast %28 : vector<128x1xf32> to vector<8x16xf32>
      %cst_27 = arith.constant dense<0xFF800000> : vector<8xf32>
      %30 = vector.multi_reduction <maximumf>, %29, %cst_27 [1] : vector<8x16xf32> to vector<8xf32>
      %31 = vector.shape_cast %30 : vector<8xf32> to vector<8x1xf32>
      %32 = vector.broadcast %31 : vector<8x1xf32> to vector<8x16xf32>
      %33 = arith.subf %29, %32 : vector<8x16xf32>
      %34 = math.exp %33 : vector<8x16xf32>
      %cst_28 = arith.constant dense<0.000000e+00> : vector<8xf32>
      %35 = vector.multi_reduction <add>, %34, %cst_28 [1] : vector<8x16xf32> to vector<8xf32>
      %36 = vector.shape_cast %35 : vector<8xf32> to vector<8x1xf32>
      %37 = tpu.reciprocal %36 {approx = true} : vector<8x1xf32> -> vector<8x1xf32>
      %38 = vector.broadcast %37 : vector<8x1xf32> to vector<8x16xf32>
      %39 = arith.mulf %34, %38 : vector<8x16xf32>
      %c0_29 = arith.constant 0 : index
      %c0_30 = arith.constant 0 : index
      %40 = vector.load %arg15[%c0_29, %c0_30] : memref<8x16xf32, #tpu.memory_space<vmem>>, vector<8x16xf32>
      tpu.vector_store %arg15[%c0_29, %c0_30], %39 {strides = array<i32>} : memref<8x16xf32, #tpu.memory_space<vmem>>, vector<8x16xf32>,
      %41 = vector.shape_cast %39 : vector<8x16xf32> to vector<8x1x16xf32>
      %42 = arith.truncf %41 : vector<8x1x16xf32> to vector<8x1x16xbf16>
      "tpu.trace_start"() <{level = 10 : i32, message = "bqs,bse->bqe"}> : () -> ()
      %cst_31 = arith.constant dense<0.000000e+00> : vector<8x1x64xf32>
      %43 = tpu.matmul %42, %14, %cst_31 {dimension_numbers = #tpu.dot_dimension_numbers<[2], [1], [1], [2], [0, 0, 0, 1, 1, 2], [0], [0]>} : vector<8x1x16xbf16>, vector<8x16x64xbf16>, vector<8x1x64xf32> -> vector<8x1x64xf32>
      "tpu.trace_stop"() : () -> ()
      %44 = vector.shape_cast %43 : vector<8x1x64xf32> to vector<8x64xf32>
      %45 = arith.truncf %11 : vector<8x16xf32> to vector<8x16xbf16>
      %46 = arith.truncf %44 : vector<8x64xf32> to vector<8x64xbf16>
      %47 = tpu.concatenate %45, %46, %15 in 1 : vector<8x16xbf16>, vector<8x64xbf16>, vector<8x64xbf16> -> vector<8x144xbf16>
      %c0_32 = arith.constant 0 : index
      %c0_33 = arith.constant 0 : index
      %48 = vector.load %arg8[%c0_32, %c0_33] : memref<144x256xbf16, #tpu.memory_space<vmem>>, vector<144x256xbf16>
      %cst_34 = arith.constant dense<0.000000e+00> : vector<8x256xf32>
      %49 = tpu.matmul %47, %48, %cst_34 {dimension_numbers = #tpu.dot_dimension_numbers<[1], [0], [0], [1], [0, 0, 1, 1], [], []>} : vector<8x144xbf16>, vector<144x256xbf16>, vector<8x256xf32> -> vector<8x256xf32>
      %c0_35 = arith.constant 0 : index
      %c0_36 = arith.constant 0 : index
      %50 = vector.load %arg9[%c0_35, %c0_36] : memref<1x256xf32, #tpu.memory_space<vmem>>, vector<1x256xf32>
      %51 = vector.broadcast %50 : vector<1x256xf32> to vector<8x256xf32>
      %52 = arith.addf %49, %51 : vector<8x256xf32>
      %53 = vector.extract_strided_slice %52 {offsets = [0, 0], sizes = [8, 64], strides = [1, 1]} : vector<8x256xf32> to vector<8x64xf32>
      %54 = arith.negf %53 : vector<8x64xf32>
      %55 = math.exp %54 : vector<8x64xf32>
      %cst_37 = arith.constant 1.000000e+00 : f32
      %56 = vector.broadcast %cst_37 : f32 to vector<8x64xf32>
      %57 = arith.addf %56, %55 : vector<8x64xf32>
      %58 = arith.divf %56, %57 : vector<8x64xf32>
      %59 = vector.extract_strided_slice %52 {offsets = [0, 64], sizes = [8, 64], strides = [1, 1]} : vector<8x256xf32> to vector<8x64xf32>
      %60 = arith.negf %59 : vector<8x64xf32>
      %61 = math.exp %60 : vector<8x64xf32>
      %cst_38 = arith.constant 1.000000e+00 : f32
      %62 = vector.broadcast %cst_38 : f32 to vector<8x64xf32>
      %63 = arith.addf %62, %61 : vector<8x64xf32>
      %64 = arith.divf %62, %63 : vector<8x64xf32>
      %65 = vector.extract_strided_slice %52 {offsets = [0, 128], sizes = [8, 64], strides = [1, 1]} : vector<8x256xf32> to vector<8x64xf32>
      %66 = math.tanh %65 : vector<8x64xf32>
      %67 = vector.extract_strided_slice %52 {offsets = [0, 192], sizes = [8, 64], strides = [1, 1]} : vector<8x256xf32> to vector<8x64xf32>
      %68 = arith.negf %67 : vector<8x64xf32>
      %69 = math.exp %68 : vector<8x64xf32>
      %cst_39 = arith.constant 1.000000e+00 : f32
      %70 = vector.broadcast %cst_39 : f32 to vector<8x64xf32>
      %71 = arith.addf %70, %69 : vector<8x64xf32>
      %72 = arith.divf %70, %71 : vector<8x64xf32>
      %73 = arith.mulf %64, %13 : vector<8x64xf32>
      %74 = arith.mulf %58, %66 : vector<8x64xf32>
      %75 = arith.addf %73, %74 : vector<8x64xf32>
      %76 = math.tanh %75 : vector<8x64xf32>
      %77 = arith.mulf %72, %76 : vector<8x64xf32>
      %c0_40 = arith.constant 0 : index
      %c0_41 = arith.constant 0 : index
      %78 = vector.load %arg14[%c0_40, %c0_41] : memref<8x64xf32, #tpu.memory_space<vmem>>, vector<8x64xf32>
      tpu.vector_store %arg14[%c0_40, %c0_41], %75 {strides = array<i32>} : memref<8x64xf32, #tpu.memory_space<vmem>>, vector<8x64xf32>,
      %c0_42 = arith.constant 0 : index
      %c0_43 = arith.constant 0 : index
      %79 = vector.load %arg13[%c0_42, %c0_43] : memref<8x64xf32, #tpu.memory_space<vmem>>, vector<8x64xf32>
      tpu.vector_store %arg13[%c0_42, %c0_43], %77 {strides = array<i32>} : memref<8x64xf32, #tpu.memory_space<vmem>>, vector<8x64xf32>,
      %80 = arith.truncf %77 : vector<8x64xf32> to vector<8x64xbf16>
      %c0_44 = arith.constant 0 : index
      %c0_45 = arith.constant 0 : index
      %81 = vector.load %arg16[%c0_44, %c0_45] : memref<8x64xbf16, #tpu.memory_space<vmem>>, vector<8x64xbf16>
      tpu.vector_store %arg16[%c0_44, %c0_45], %80 {strides = array<i32>} : memref<8x64xbf16, #tpu.memory_space<vmem>>, vector<8x64xbf16>,
    } else {
    }
    %c0 = arith.constant 0 : index
    %c0_1 = arith.constant 0 : index
    %3 = vector.load %arg16[%c0, %c0_1] : memref<8x64xbf16, #tpu.memory_space<vmem>>, vector<8x64xbf16>
    %c0_2 = arith.constant 0 : index
    %c0_3 = arith.constant 0 : index
    %c0_4 = arith.constant 0 : index
    %4 = vector.load %arg10[%c0_2, %c0_3, %c0_4] : memref<1x64x128xbf16, #tpu.memory_space<vmem>>, vector<1x64x128xbf16>
    %5 = vector.shape_cast %4 : vector<1x64x128xbf16> to vector<64x128xbf16>
    %cst = arith.constant dense<0.000000e+00> : vector<8x128xf32>
    %6 = tpu.matmul %3, %5, %cst {dimension_numbers = #tpu.dot_dimension_numbers<[1], [0], [0], [1], [0, 0, 1, 1], [], []>} : vector<8x64xbf16>, vector<64x128xbf16>, vector<8x128xf32> -> vector<8x128xf32>
    %c0_5 = arith.constant 0 : index
    %c0_6 = arith.constant 0 : index
    %7 = vector.load %arg11[%c0_5, %c0_6] : memref<1x128xf32, #tpu.memory_space<vmem>>, vector<1x128xf32>
    %8 = vector.broadcast %7 : vector<1x128xf32> to vector<8x128xf32>
    %9 = arith.addf %6, %8 : vector<8x128xf32>
    %c0_7 = arith.constant 0 : index
    %c0_8 = arith.constant 0 : index
    %10 = vector.load %arg12[%c0_7, %c0_8] : memref<8x128xf32, #tpu.memory_space<vmem>>, vector<8x128xf32>
    tpu.vector_store %arg12[%c0_7, %c0_8], %9 {strides = array<i32>} : memref<8x128xf32, #tpu.memory_space<vmem>>, vector<8x128xf32>,
    return
  }
  func.func @transform_0(%arg0: i32) -> (i32, i32) {
    %c0_i32 = arith.constant 0 : i32
    %c0_i32_0 = arith.constant 0 : i32
    %c0_i32_1 = arith.constant 0 : i32
    return %c0_i32, %c0_i32_0 : i32, i32
  }
  func.func @transform_1(%arg0: i32) -> (i32, i32) {
    %c0_i32 = arith.constant 0 : i32
    %c0_i32_0 = arith.constant 0 : i32
    %c0_i32_1 = arith.constant 0 : i32
    return %c0_i32, %c0_i32_0 : i32, i32
  }
  func.func @transform_2(%arg0: i32) -> (i32, i32) {
    %c0_i32 = arith.constant 0 : i32
    %c0_i32_0 = arith.constant 0 : i32
    %c0_i32_1 = arith.constant 0 : i32
    return %c0_i32, %c0_i32_0 : i32, i32
  }
  func.func @transform_3(%arg0: i32) -> (i32, i32, i32) {
    %c0_i32 = arith.constant 0 : i32
    %c0_i32_0 = arith.constant 0 : i32
    %c0_i32_1 = arith.constant 0 : i32
    %c0_i32_2 = arith.constant 0 : i32
    return %c0_i32, %c0_i32_0, %c0_i32_1 : i32, i32, i32
  }
  func.func @transform_4(%arg0: i32) -> (i32, i32) {
    %c0_i32 = arith.constant 0 : i32
    %c0_i32_0 = arith.constant 0 : i32
    %c0_i32_1 = arith.constant 0 : i32
    return %c0_i32, %c0_i32_0 : i32, i32
  }
  func.func @transform_5(%arg0: i32) -> (i32, i32) {
    %c0_i32 = arith.constant 0 : i32
    %c0_i32_0 = arith.constant 0 : i32
    %c0_i32_1 = arith.constant 0 : i32
    return %c0_i32, %c0_i32_0 : i32, i32
  }
  func.func @transform_6(%arg0: i32) -> (i32, i32) {
    %c0_i32 = arith.constant 0 : i32
    %c0_i32_0 = arith.constant 0 : i32
    %c0_i32_1 = arith.constant 0 : i32
    return %c0_i32, %c0_i32_0 : i32, i32
  }
  func.func @transform_7(%arg0: i32) -> (i32, i32) {
    %c0_i32 = arith.constant 0 : i32
    %c0_i32_0 = arith.constant 0 : i32
    %c0_i32_1 = arith.constant 0 : i32
    return %c0_i32, %c0_i32_0 : i32, i32
  }
  func.func @transform_8(%arg0: i32) -> (i32, i32) {
    %c0_i32 = arith.constant 0 : i32
    %c0_i32_0 = arith.constant 0 : i32
    %c0_i32_1 = arith.constant 0 : i32
    return %c0_i32, %c0_i32_0 : i32, i32
  }
  func.func @transform_9(%arg0: i32) -> (i32, i32, i32) {
    %c0_i32 = arith.constant 0 : i32
    %c0_i32_0 = arith.constant 0 : i32
    %c0_i32_1 = arith.constant 0 : i32
    return %arg0, %c0_i32, %c0_i32_0 : i32, i32, i32
  }
  func.func @transform_10(%arg0: i32) -> (i32, i32) {
    %c0_i32 = arith.constant 0 : i32
    %c0_i32_0 = arith.constant 0 : i32
    return %c0_i32, %arg0 : i32, i32
  }
  func.func @transform_11(%arg0: i32) -> (i32, i32) {
    %c0_i32 = arith.constant 0 : i32
    %c0_i32_0 = arith.constant 0 : i32
    return %c0_i32, %arg0 : i32, i32
  }
  func.func @transform_12(%arg0: i32) -> (i32, i32) {
    %c0_i32 = arith.constant 0 : i32
    %c0_i32_0 = arith.constant 0 : i32
    %c0_i32_1 = arith.constant 0 : i32
    return %c0_i32, %c0_i32_0 : i32, i32
  }
  func.func @transform_13(%arg0: i32) -> (i32, i32) {
    %c0_i32 = arith.constant 0 : i32
    %c0_i32_0 = arith.constant 0 : i32
    %c0_i32_1 = arith.constant 0 : i32
    return %c0_i32, %c0_i32_0 : i32, i32
  }
  func.func @transform_14(%arg0: i32) -> (i32, i32) {
    %c0_i32 = arith.constant 0 : i32
    %c0_i32_0 = arith.constant 0 : i32
    %c0_i32_1 = arith.constant 0 : i32
    return %c0_i32, %c0_i32_0 : i32, i32
  }
}

</mosaic_0001>

<llo_original>
// kernel: tpu_custom_call.1
$region0: #{tpu_custom_call.1}
  #allocation0 [shape = 'u32[]', space=smem, size = 0x4, offset = 0x4, fixed_abs, tag = 'smem constant byte address 0x4 - core index']
  #allocation1 [shape = 'u32[144,128]{1,0:T(1,128)}', space=vmem, size = 0x12000, scoped, tag = 'internal scratch']
  #allocation2 [shape = 'bf16[8,64]{1,0:T(8,128)(2,1)}', space=vmem, size = 0x800, scoped, tag = 'scratch operand']
  %s0 = inlined_call_operand.vmem [shape: f32[8,16], index: 0, kind: input, shape index: {}]
  %s1 = inlined_call_operand.hbm [shape: f32[8,64], index: 1, kind: input, shape index: {}]
  %s2 = inlined_call_operand.hbm [shape: f32[8,64], index: 2, kind: input, shape index: {}]
  %s3 = inlined_call_operand.hbm [shape: bf16[8,16,64], index: 3, kind: input, shape index: {}]
  %s4 = inlined_call_operand.vmem [shape: bf16[64,32], index: 4, kind: input, shape index: {}]
  %s5 = inlined_call_operand.vmem [shape: bf16[64,32], index: 5, kind: input, shape index: {}]
  %s6 = inlined_call_operand.vmem [shape: f32[32,1], index: 6, kind: input, shape index: {}]
  %s7 = inlined_call_operand.vmem [shape: bf16[144,256], index: 7, kind: input, shape index: {}]
  %s8 = inlined_call_operand.vmem [shape: f32[1,256], index: 8, kind: input, shape index: {}]
  %s9 = inlined_call_operand.hbm [shape: bf16[2,64,128], index: 9, kind: input, shape index: {}]
  %s10 = inlined_call_operand.vmem [shape: f32[1,256], index: 10, kind: input, shape index: {}]
  %s11 = inlined_call_operand.hbm [shape: f32[8,256], index: 11, kind: output, shape index: {0}]
  %s12 = inlined_call_operand.hbm [shape: f32[8,64], index: 12, kind: output, shape index: {1}]
  %s13 = inlined_call_operand.hbm [shape: f32[8,64], index: 13, kind: output, shape index: {2}]
  %s14 = inlined_call_operand.hbm [shape: f32[8,16], index: 14, kind: output, shape index: {3}]
  %15 = xla_tuple %s11, %s12, %s13, %s14
  %s16 = sld [smem:[#allocation0]]
  $region121: #{tpu_custom_call.1} parent=0
    _
  %s18 = ssub.s32 1, %s16
  %s19 = scalar_select 0, %s18, %s16
  $region1: #{tpu_custom_call.1} parent=0
    #allocation3 [shape = 'u8[4096]{0}', space=vmem, size = 0x1000, scoped, tag = 'input window, operand 1, single buffered']
    #allocation4 [shape = 's32[2]{0}', space=sflag, size = 0x8, scoped, tag = 'scoped memory for tpu_custom_call.1']
    #allocation5 [shape = 's32[2]{0}', space=sflag, size = 0x8, scoped, tag = 'scoped memory for tpu_custom_call.1']
    #allocation6 [shape = 'u8[4096]{0}', space=vmem, size = 0x1000, scoped, tag = 'input window, operand 2, single buffered']
    #allocation7 [shape = 's32[1]{0}', space=sflag, size = 0x4, scoped, tag = 'scoped memory for tpu_custom_call.1']
    #allocation8 [shape = 'u8[32768]{0}', space=vmem, size = 0x8000, scoped, tag = 'input window, operand 3, single buffered']
    #allocation9 [shape = 'u8[32768]{0}', space=vmem, size = 0x8000, scoped, tag = 'input window, operand 9']
    #allocation10 [shape = 's32[2]{0}', space=sflag, size = 0x8, scoped, tag = 'scoped memory for tpu_custom_call.1']
    #allocation11 [shape = 'u8[8192]{0}', space=vmem, size = 0x2000, scoped, tag = 'output window, operand 0']
    #allocation12 [shape = 'u8[4096]{0}', space=vmem, size = 0x1000, scoped, tag = 'output window, operand 1, single buffered']
    #allocation13 [shape = 's32[1]{0}', space=sflag, size = 0x4, scoped, tag = 'scoped memory for tpu_custom_call.1']
    #allocation14 [shape = 'u8[4096]{0}', space=vmem, size = 0x1000, scoped, tag = 'output window, operand 2, single buffered']
    #allocation15 [shape = 'u8[4096]{0}', space=vmem, size = 0x1000, scoped, tag = 'output window, operand 3, single buffered']
    #allocation16 [shape = 's32[1]{0}', space=sflag, size = 0x4, scoped, tag = 'scoped memory for tpu_custom_call.1']
    %20 = vsyncpa [#allocation4], 0
    %21 = vsyncpa [#allocation7], 0
    %22 = vsyncpa [#allocation10], 0
    %s23 = scalar_lea.sflag [#allocation10], 1
    %24 = vsyncpa %s23, 0
    %25 = vsyncpa [#allocation5], 0
    %s26 = scalar_lea.sflag [#allocation5], 1
    %27 = vsyncpa %s26, 0
    %28 = vsyncpa [#allocation13], 0
    %29 = vsyncpa [#allocation16], 0
    loop: start=0, step=1, limit=4
    $region2: #{tpu_custom_call.1} parent=1 // loop_pre_header
      _
    $region3: #{tpu_custom_call.1} parent=1 // loop_header
      %s31 = sphi 0, %s35
      %p32 = scmp.ge.s32.totalorder %s31, 4
      %s39 = sphi 0, %s39
      %s41 = sphi 0, %s39
      %s42 = sphi 0, %s41
      %s56 = sphi 0, %s42
      %s60 = sphi 0, %s60
      %s62 = sphi 0, %s60
      %s63 = sphi 0, %s62
      %s77 = sphi 0, %s63
      %s81 = sphi 0, %s81
      %s83 = sphi 0, %s81
      %s84 = sphi 0, %s83
      %s98 = sphi 0, %s84
      %s102 = sphi 0, %s102
      %s104 = sphi 0, %s102
      %s105 = sphi 0, %s104
      %s119 = sphi 0, %s105
      %s123 = sphi 0, %s123
      %s125 = sphi 0, %s123
      %s126 = sphi 0, %s125
      %s140 = sphi 0, %s126
      %s144 = sphi 0, %s144
      %s146 = sphi 0, %s144
      %s147 = sphi 0, %s146
      %s161 = sphi 0, %s147
      %s165 = sphi 0, %s165
      %s167 = sphi 0, %s165
      %s168 = sphi 0, %s167
      %s182 = sphi 0, %s168
      %s186 = sphi 0, %s186
      %s188 = sphi 0, %s186
      %s189 = sphi 0, %s188
      %s203 = sphi 0, %s189
      %s207 = sphi 0, %s207
      %s209 = sphi 0, %s207
      %s210 = sphi 0, %s209
      %s224 = sphi 0, %s210
      %s230 = sphi 0, %s232
      %s233 = sphi 0, %s230
      %s234 = sphi 0, %s233
      %s250 = sphi 0, %s234
      %s256 = sphi 0, %s258
      %s259 = sphi 0, %s256
      %s260 = sphi 0, %s259
      %s276 = sphi 0, %s260
      %s282 = sphi 0, %s284
      %s285 = sphi 0, %s282
      %s286 = sphi 0, %s285
      %s302 = sphi 0, %s286
      %s306 = sphi 0, %s306
      %s308 = sphi 0, %s306
      %s309 = sphi 0, %s308
      %s323 = sphi 0, %s309
      %s327 = sphi 0, %s327
      %s329 = sphi 0, %s327
      %s330 = sphi 0, %s329
      %s344 = sphi 0, %s330
      %s348 = sphi 0, %s348
      %s350 = sphi 0, %s348
      %s351 = sphi 0, %s350
      %s365 = sphi 0, %s351
    $region4: #{tpu_custom_call.1} parent=1 // loop_header_branch
      %34 = sbr.rel (%p32) target = $region8
    $region5: #{tpu_custom_call.1} parent=1 // loop_body
      %s36 = ssub.s32 %s31, 1
      %s37 = ssub.s32 %s31, 2
      %s38 = sadd.s32 %s31, 1
      %s40 = sadd.s32 %s39, 1
      %p43 = scmp.eq.s32.totalorder %s31, 1
      %p44 = scmp.ne.s32.totalorder %s39, %s41
      %p45 = scmp.eq.s32.totalorder %s31, 0
      %p46 = por %p44, %p45
      %p47 = scmp.ne.s32.totalorder %s39, %s41
      %p48 = scmp.eq.s32.totalorder %s36, 1
      %p49 = por %p47, %p48
      %p50 = scmp.ne.s32.totalorder %s41, %s42
      %p51 = scmp.eq.s32.totalorder %s36, 0
      %p52 = por %p50, %p51
      %p53 = scmp.ne.s32.totalorder %s41, %s42
      %p54 = scmp.eq.s32.totalorder %s37, 1
      %p55 = por %p53, %p54
      %p57 = scmp.ne.s32.totalorder %s42, %s56
      %p58 = scmp.eq.s32.totalorder %s37, 0
      %p59 = por %p57, %p58
      %s61 = sadd.s32 %s60, 1
      %p64 = scmp.eq.s32.totalorder %s31, 1
      %p65 = scmp.ne.s32.totalorder %s60, %s62
      %p66 = scmp.eq.s32.totalorder %s31, 0
      %p67 = por %p65, %p66
      %p68 = scmp.ne.s32.totalorder %s60, %s62
      %p69 = scmp.eq.s32.totalorder %s36, 1
      %p70 = por %p68, %p69
      %p71 = scmp.ne.s32.totalorder %s62, %s63
      %p72 = scmp.eq.s32.totalorder %s36, 0
      %p73 = por %p71, %p72
      %p74 = scmp.ne.s32.totalorder %s62, %s63
      %p75 = scmp.eq.s32.totalorder %s37, 1
      %p76 = por %p74, %p75
      %p78 = scmp.ne.s32.totalorder %s63, %s77
      %p79 = scmp.eq.s32.totalorder %s37, 0
      %p80 = por %p78, %p79
      %s82 = sadd.s32 %s81, 1
      %p85 = scmp.eq.s32.totalorder %s31, 1
      %p86 = scmp.ne.s32.totalorder %s81, %s83
      %p87 = scmp.eq.s32.totalorder %s31, 0
      %p88 = por %p86, %p87
      %p89 = scmp.ne.s32.totalorder %s81, %s83
      %p90 = scmp.eq.s32.totalorder %s36, 1
      %p91 = por %p89, %p90
      %p92 = scmp.ne.s32.totalorder %s83, %s84
      %p93 = scmp.eq.s32.totalorder %s36, 0
      %p94 = por %p92, %p93
      %p95 = scmp.ne.s32.totalorder %s83, %s84
      %p96 = scmp.eq.s32.totalorder %s37, 1
      %p97 = por %p95, %p96
      %p99 = scmp.ne.s32.totalorder %s84, %s98
      %p100 = scmp.eq.s32.totalorder %s37, 0
      %p101 = por %p99, %p100
      %s103 = sadd.s32 %s102, 1
      %p106 = scmp.eq.s32.totalorder %s31, 1
      %p107 = scmp.ne.s32.totalorder %s102, %s104
      %p108 = scmp.eq.s32.totalorder %s31, 0
      %p109 = por %p107, %p108
      %p110 = scmp.ne.s32.totalorder %s102, %s104
      %p111 = scmp.eq.s32.totalorder %s36, 1
      %p112 = por %p110, %p111
      %p113 = scmp.ne.s32.totalorder %s104, %s105
      %p114 = scmp.eq.s32.totalorder %s36, 0
      %p115 = por %p113, %p114
      %p116 = scmp.ne.s32.totalorder %s104, %s105
      %p117 = scmp.eq.s32.totalorder %s37, 1
      %p118 = por %p116, %p117
      %p120 = scmp.ne.s32.totalorder %s105, %s119
      %p121 = scmp.eq.s32.totalorder %s37, 0
      %p122 = por %p120, %p121
      %s124 = sadd.s32 %s123, 1
      %p127 = scmp.eq.s32.totalorder %s31, 1
      %p128 = scmp.ne.s32.totalorder %s123, %s125
      %p129 = scmp.eq.s32.totalorder %s31, 0
      %p130 = por %p128, %p129
      %p131 = scmp.ne.s32.totalorder %s123, %s125
      %p132 = scmp.eq.s32.totalorder %s36, 1
      %p133 = por %p131, %p132
      %p134 = scmp.ne.s32.totalorder %s125, %s126
      %p135 = scmp.eq.s32.totalorder %s36, 0
      %p136 = por %p134, %p135
      %p137 = scmp.ne.s32.totalorder %s125, %s126
      %p138 = scmp.eq.s32.totalorder %s37, 1
      %p139 = por %p137, %p138
      %p141 = scmp.ne.s32.totalorder %s126, %s140
      %p142 = scmp.eq.s32.totalorder %s37, 0
      %p143 = por %p141, %p142
      %s145 = sadd.s32 %s144, 1
      %p148 = scmp.eq.s32.totalorder %s31, 1
      %p149 = scmp.ne.s32.totalorder %s144, %s146
      %p150 = scmp.eq.s32.totalorder %s31, 0
      %p151 = por %p149, %p150
      %p152 = scmp.ne.s32.totalorder %s144, %s146
      %p153 = scmp.eq.s32.totalorder %s36, 1
      %p154 = por %p152, %p153
      %p155 = scmp.ne.s32.totalorder %s146, %s147
      %p156 = scmp.eq.s32.totalorder %s36, 0
      %p157 = por %p155, %p156
      %p158 = scmp.ne.s32.totalorder %s146, %s147
      %p159 = scmp.eq.s32.totalorder %s37, 1
      %p160 = por %p158, %p159
      %p162 = scmp.ne.s32.totalorder %s147, %s161
      %p163 = scmp.eq.s32.totalorder %s37, 0
      %p164 = por %p162, %p163
      %s166 = sadd.s32 %s165, 1
      %p169 = scmp.eq.s32.totalorder %s31, 1
      %p170 = scmp.ne.s32.totalorder %s165, %s167
      %p171 = scmp.eq.s32.totalorder %s31, 0
      %p172 = por %p170, %p171
      %p173 = scmp.ne.s32.totalorder %s165, %s167
      %p174 = scmp.eq.s32.totalorder %s36, 1
      %p175 = por %p173, %p174
      %p176 = scmp.ne.s32.totalorder %s167, %s168
      %p177 = scmp.eq.s32.totalorder %s36, 0
      %p178 = por %p176, %p177
      %p179 = scmp.ne.s32.totalorder %s167, %s168
      %p180 = scmp.eq.s32.totalorder %s37, 1
      %p181 = por %p179, %p180
      %p183 = scmp.ne.s32.totalorder %s168, %s182
      %p184 = scmp.eq.s32.totalorder %s37, 0
      %p185 = por %p183, %p184
      %s187 = sadd.s32 %s186, 1
      %p190 = scmp.eq.s32.totalorder %s31, 1
      %p191 = scmp.ne.s32.totalorder %s186, %s188
      %p192 = scmp.eq.s32.totalorder %s31, 0
      %p193 = por %p191, %p192
      %p194 = scmp.ne.s32.totalorder %s186, %s188
      %p195 = scmp.eq.s32.totalorder %s36, 1
      %p196 = por %p194, %p195
      %p197 = scmp.ne.s32.totalorder %s188, %s189
      %p198 = scmp.eq.s32.totalorder %s36, 0
      %p199 = por %p197, %p198
      %p200 = scmp.ne.s32.totalorder %s188, %s189
      %p201 = scmp.eq.s32.totalorder %s37, 1
      %p202 = por %p200, %p201
      %p204 = scmp.ne.s32.totalorder %s189, %s203
      %p205 = scmp.eq.s32.totalorder %s37, 0
      %p206 = por %p204, %p205
      %s208 = sadd.s32 %s207, 1
      %p211 = scmp.eq.s32.totalorder %s31, 1
      %p212 = scmp.ne.s32.totalorder %s207, %s209
      %p213 = scmp.eq.s32.totalorder %s31, 0
      %p214 = por %p212, %p213
      %p215 = scmp.ne.s32.totalorder %s207, %s209
      %p216 = scmp.eq.s32.totalorder %s36, 1
      %p217 = por %p215, %p216
      %p218 = scmp.ne.s32.totalorder %s209, %s210
      %p219 = scmp.eq.s32.totalorder %s36, 0
      %p220 = por %p218, %p219
      %p221 = scmp.ne.s32.totalorder %s209, %s210
      %p222 = scmp.eq.s32.totalorder %s37, 1
      %p223 = por %p221, %p222
      %p225 = scmp.ne.s32.totalorder %s210, %s224
      %p226 = scmp.eq.s32.totalorder %s37, 0
      %p227 = por %p225, %p226
      %s228 = ssub.s32 %s31, %s38
      %p229 = scmp.eq.s32.totalorder %s228, 0
      %s231 = sadd.s32 %s230, 1
      %s232 = scalar_select %p229, %s230, %s231
      %p235 = pneg %p229
      %p236 = scmp.eq.s32.totalorder %s31, 1
      %p237 = por %p235, %p236
      %p238 = scmp.ne.s32.totalorder %s230, %s233
      %p239 = scmp.eq.s32.totalorder %s31, 0
      %p240 = por %p238, %p239
      %p241 = scmp.ne.s32.totalorder %s230, %s233
      %p242 = scmp.eq.s32.totalorder %s36, 1
      %p243 = por %p241, %p242
      %p244 = scmp.ne.s32.totalorder %s233, %s234
      %p245 = scmp.eq.s32.totalorder %s36, 0
      %p246 = por %p244, %p245
      %p247 = scmp.ne.s32.totalorder %s233, %s234
      %p248 = scmp.eq.s32.totalorder %s37, 1
      %p249 = por %p247, %p248
      %p251 = scmp.ne.s32.totalorder %s234, %s250
      %p252 = scmp.eq.s32.totalorder %s37, 0
      %p253 = por %p251, %p252
      %s254 = ssub.s32 %s31, %s38
      %p255 = scmp.eq.s32.totalorder %s254, 0
      %s257 = sadd.s32 %s256, 1
      %s258 = scalar_select %p255, %s256, %s257
      %p261 = pneg %p255
      %p262 = scmp.eq.s32.totalorder %s31, 1
      %p263 = por %p261, %p262
      %p264 = scmp.ne.s32.totalorder %s256, %s259
      %p265 = scmp.eq.s32.totalorder %s31, 0
      %p266 = por %p264, %p265
      %p267 = scmp.ne.s32.totalorder %s256, %s259
      %p268 = scmp.eq.s32.totalorder %s36, 1
      %p269 = por %p267, %p268
      %p270 = scmp.ne.s32.totalorder %s259, %s260
      %p271 = scmp.eq.s32.totalorder %s36, 0
      %p272 = por %p270, %p271
      %p273 = scmp.ne.s32.totalorder %s259, %s260
      %p274 = scmp.eq.s32.totalorder %s37, 1
      %p275 = por %p273, %p274
      %p277 = scmp.ne.s32.totalorder %s260, %s276
      %p278 = scmp.eq.s32.totalorder %s37, 0
      %p279 = por %p277, %p278
      %s280 = ssub.s32 %s31, %s38
      %p281 = scmp.eq.s32.totalorder %s280, 0
      %s283 = sadd.s32 %s282, 1
      %s284 = scalar_select %p281, %s282, %s283
      %p287 = pneg %p281
      %p288 = scmp.eq.s32.totalorder %s31, 1
      %p289 = por %p287, %p288
      %p290 = scmp.ne.s32.totalorder %s282, %s285
      %p291 = scmp.eq.s32.totalorder %s31, 0
      %p292 = por %p290, %p291
      %p293 = scmp.ne.s32.totalorder %s282, %s285
      %p294 = scmp.eq.s32.totalorder %s36, 1
      %p295 = por %p293, %p294
      %p296 = scmp.ne.s32.totalorder %s285, %s286
      %p297 = scmp.eq.s32.totalorder %s36, 0
      %p298 = por %p296, %p297
      %p299 = scmp.ne.s32.totalorder %s285, %s286
      %p300 = scmp.eq.s32.totalorder %s37, 1
      %p301 = por %p299, %p300
      %p303 = scmp.ne.s32.totalorder %s286, %s302
      %p304 = scmp.eq.s32.totalorder %s37, 0
      %p305 = por %p303, %p304
      %s307 = sadd.s32 %s306, 1
      %p310 = scmp.eq.s32.totalorder %s31, 1
      %p311 = scmp.ne.s32.totalorder %s306, %s308
      %p312 = scmp.eq.s32.totalorder %s31, 0
      %p313 = por %p311, %p312
      %p314 = scmp.ne.s32.totalorder %s306, %s308
      %p315 = scmp.eq.s32.totalorder %s36, 1
      %p316 = por %p314, %p315
      %p317 = scmp.ne.s32.totalorder %s308, %s309
      %p318 = scmp.eq.s32.totalorder %s36, 0
      %p319 = por %p317, %p318
      %p320 = scmp.ne.s32.totalorder %s308, %s309
      %p321 = scmp.eq.s32.totalorder %s37, 1
      %p322 = por %p320, %p321
      %p324 = scmp.ne.s32.totalorder %s309, %s323
      %p325 = scmp.eq.s32.totalorder %s37, 0
      %p326 = por %p324, %p325
      %s328 = sadd.s32 %s327, 1
      %p331 = scmp.eq.s32.totalorder %s31, 1
      %p332 = scmp.ne.s32.totalorder %s327, %s329
      %p333 = scmp.eq.s32.totalorder %s31, 0
      %p334 = por %p332, %p333
      %p335 = scmp.ne.s32.totalorder %s327, %s329
      %p336 = scmp.eq.s32.totalorder %s36, 1
      %p337 = por %p335, %p336
      %p338 = scmp.ne.s32.totalorder %s329, %s330
      %p339 = scmp.eq.s32.totalorder %s36, 0
      %p340 = por %p338, %p339
      %p341 = scmp.ne.s32.totalorder %s329, %s330
      %p342 = scmp.eq.s32.totalorder %s37, 1
      %p343 = por %p341, %p342
      %p345 = scmp.ne.s32.totalorder %s330, %s344
      %p346 = scmp.eq.s32.totalorder %s37, 0
      %p347 = por %p345, %p346
      %s349 = sadd.s32 %s348, 1
      %p352 = scmp.eq.s32.totalorder %s31, 1
      %p353 = scmp.ne.s32.totalorder %s348, %s350
      %p354 = scmp.eq.s32.totalorder %s31, 0
      %p355 = por %p353, %p354
      %p356 = scmp.ne.s32.totalorder %s348, %s350
      %p357 = scmp.eq.s32.totalorder %s36, 1
      %p358 = por %p356, %p357
      %p359 = scmp.ne.s32.totalorder %s350, %s351
      %p360 = scmp.eq.s32.totalorder %s36, 0
      %p361 = por %p359, %p360
      %p362 = scmp.ne.s32.totalorder %s350, %s351
      %p363 = scmp.eq.s32.totalorder %s37, 1
      %p364 = por %p362, %p363
      %p366 = scmp.ne.s32.totalorder %s351, %s365
      %p367 = scmp.eq.s32.totalorder %s37, 0
      %p368 = por %p366, %p367
      %p369 = scmp.le.s32.totalorder 1, %s31
      %p370 = scmp.lt.s32.totalorder %s31, 3
      %p371 = pnand %p369, %p370
      %p372 = pneg %p371
      // Predicated region
      $region9: #{tpu_custom_call.1} parent=5 // pred_check
        _
      $region10: #{tpu_custom_call.1} parent=5 // pred_check_branch
        %374 = sbr.rel (%p371) target = $region12
      $region11: #{tpu_custom_call.1} parent=5 // pred_region
        %s375 = ssub.s32 %s31, 1
        // Predicated region
        $region13: #{tpu_custom_call.1} parent=11 // pred_check
          %p376 = pneg %p52
        $region14: #{tpu_custom_call.1} parent=11 // pred_check_branch
          %378 = sbr.rel (%p376) target = $region16
        $region15: #{tpu_custom_call.1} parent=11 // pred_region
          _
        $region16: #{tpu_custom_call.1} parent=11 // pred_fallthru
          _
        // Predicated region
        $region17: #{tpu_custom_call.1} parent=11 // pred_check
          %p379 = pneg %p73
        $region18: #{tpu_custom_call.1} parent=11 // pred_check_branch
          %381 = sbr.rel (%p379) target = $region20
        $region19: #{tpu_custom_call.1} parent=11 // pred_region
          %s383 = ssub.s32 128, 128
          %384 = vsyncadd [#allocation4], %s383
          %s386 = sshll.u32 [#allocation3], 4
          %s387 = int_to_ptr.vmem [resolvable:$true] %s386
          %389 = dma.hbm_to_vmem [thread:$0]  %s1, 128, %s387, [#allocation4]
        $region20: #{tpu_custom_call.1} parent=11 // pred_fallthru
          _
        // Predicated region
        $region21: #{tpu_custom_call.1} parent=11 // pred_check
          %p390 = pneg %p94
        $region22: #{tpu_custom_call.1} parent=11 // pred_check_branch
          %392 = sbr.rel (%p390) target = $region24
        $region23: #{tpu_custom_call.1} parent=11 // pred_region
          %s394 = ssub.s32 128, 128
          %395 = vsyncadd [#allocation7], %s394
          %s397 = sshll.u32 [#allocation6], 4
          %s398 = int_to_ptr.vmem [resolvable:$true] %s397
          %400 = dma.hbm_to_vmem [thread:$0]  %s2, 128, %s398, [#allocation7]
        $region24: #{tpu_custom_call.1} parent=11 // pred_fallthru
          _
        // Predicated region
        $region25: #{tpu_custom_call.1} parent=11 // pred_check
          %p401 = pneg %p115
        $region26: #{tpu_custom_call.1} parent=11 // pred_check_branch
          %403 = sbr.rel (%p401) target = $region28
        $region27: #{tpu_custom_call.1} parent=11 // pred_region
          %s405 = ssub.s32 1024, 1024
          %406 = vsyncadd [#allocation7], %s405
          %s407 = sshll.u32 [#allocation8], 4
          %s408 = int_to_ptr.vmem [resolvable:$true] %s407
          %413 = dma.hbm_to_vmem [thread:$0]  %s3, 1024, %s408, [#allocation7], 64, 64, 4
        $region28: #{tpu_custom_call.1} parent=11 // pred_fallthru
          _
        // Predicated region
        $region29: #{tpu_custom_call.1} parent=11 // pred_check
          %p414 = pneg %p136
        $region30: #{tpu_custom_call.1} parent=11 // pred_check_branch
          %416 = sbr.rel (%p414) target = $region32
        $region31: #{tpu_custom_call.1} parent=11 // pred_region
          _
        $region32: #{tpu_custom_call.1} parent=11 // pred_fallthru
          _
        // Predicated region
        $region33: #{tpu_custom_call.1} parent=11 // pred_check
          %p417 = pneg %p157
        $region34: #{tpu_custom_call.1} parent=11 // pred_check_branch
          %419 = sbr.rel (%p417) target = $region36
        $region35: #{tpu_custom_call.1} parent=11 // pred_region
          _
        $region36: #{tpu_custom_call.1} parent=11 // pred_fallthru
          _
        // Predicated region
        $region37: #{tpu_custom_call.1} parent=11 // pred_check
          %p420 = pneg %p178
        $region38: #{tpu_custom_call.1} parent=11 // pred_check_branch
          %422 = sbr.rel (%p420) target = $region40
        $region39: #{tpu_custom_call.1} parent=11 // pred_region
          _
        $region40: #{tpu_custom_call.1} parent=11 // pred_fallthru
          _
        // Predicated region
        $region41: #{tpu_custom_call.1} parent=11 // pred_check
          %p423 = pneg %p199
        $region42: #{tpu_custom_call.1} parent=11 // pred_check_branch
          %425 = sbr.rel (%p423) target = $region44
        $region43: #{tpu_custom_call.1} parent=11 // pred_region
          _
        $region44: #{tpu_custom_call.1} parent=11 // pred_fallthru
          _
        // Predicated region
        $region45: #{tpu_custom_call.1} parent=11 // pred_check
          %p426 = pneg %p220
        $region46: #{tpu_custom_call.1} parent=11 // pred_check_branch
          %428 = sbr.rel (%p426) target = $region48
        $region47: #{tpu_custom_call.1} parent=11 // pred_region
          _
        $region48: #{tpu_custom_call.1} parent=11 // pred_fallthru
          _
      $region12: #{tpu_custom_call.1} parent=5 // pred_fallthru
        _
      %p429 = scmp.lt.s32.totalorder %s31, 2
      // Predicated region
      $region49: #{tpu_custom_call.1} parent=5 // pred_check
        %p430 = pneg %p429
      $region50: #{tpu_custom_call.1} parent=5 // pred_check_branch
        %432 = sbr.rel (%p430) target = $region52
      $region51: #{tpu_custom_call.1} parent=5 // pred_region
        // Predicated region
        $region53: #{tpu_custom_call.1} parent=51 // pred_check
          %p433 = pneg %p240
        $region54: #{tpu_custom_call.1} parent=51 // pred_check_branch
          %435 = sbr.rel (%p433) target = $region56
        $region55: #{tpu_custom_call.1} parent=51 // pred_region
          %s436 = sand.u32 %s230, 1
          %s437 = scalar_lea.sflag [#allocation10], %s436
          %s438 = sand.u32 %s230, 1
          %s439 = smul.addr %s438, 32
          %s440 = scalar_lea.vmem [#allocation9], %s439
          %s442 = ssub.s32 512, 512
          %443 = vsyncadd %s437, %s442
          %s444 = smul.addr %s31, 8
          %s445 = smul.addr %s444, 64
          %s446 = scalar_lea.hbm %s9, %s445
          %s447 = sshll.u32 %s440, 4
          %s448 = int_to_ptr.vmem [resolvable:$true] %s447
          %453 = dma.hbm_to_vmem [thread:$0]  %s446, 512, %s448, %s437, 64, 64, 4
        $region56: #{tpu_custom_call.1} parent=51 // pred_fallthru
          _
        // Predicated region
        $region57: #{tpu_custom_call.1} parent=51 // pred_check
          %p454 = pneg %p266
        $region58: #{tpu_custom_call.1} parent=51 // pred_check_branch
          %456 = sbr.rel (%p454) target = $region60
        $region59: #{tpu_custom_call.1} parent=51 // pred_region
          %p457 = scmp.lt.s32.totalorder %s31, 1
          %s458 = scalar_select %p457, %s31, 1
          %s459 = scalar_lea.vmem %s10, %s458
        $region60: #{tpu_custom_call.1} parent=51 // pred_fallthru
          _
      $region52: #{tpu_custom_call.1} parent=5 // pred_fallthru
        _
      %p460 = scmp.le.s32.totalorder 1, %s31
      %p461 = scmp.lt.s32.totalorder %s31, 3
      %p462 = pnand %p460, %p461
      %p463 = pneg %p462
      // Predicated region
      $region61: #{tpu_custom_call.1} parent=5 // pred_check
        _
      $region62: #{tpu_custom_call.1} parent=5 // pred_check_branch
        %465 = sbr.rel (%p462) target = $region64
      $region63: #{tpu_custom_call.1} parent=5 // pred_region
        %s466 = ssub.s32 %s31, 1
        // Predicated region
        $region65: #{tpu_custom_call.1} parent=63 // pred_check
          %p467 = pneg %p73
        $region66: #{tpu_custom_call.1} parent=63 // pred_check_branch
          %469 = sbr.rel (%p467) target = $region68
        $region67: #{tpu_custom_call.1} parent=63 // pred_region
          %470 = dma.done [#allocation4], 128
        $region68: #{tpu_custom_call.1} parent=63 // pred_fallthru
          _
        // Predicated region
        $region69: #{tpu_custom_call.1} parent=63 // pred_check
          %p471 = pneg %p94
        $region70: #{tpu_custom_call.1} parent=63 // pred_check_branch
          %473 = sbr.rel (%p471) target = $region72
        $region71: #{tpu_custom_call.1} parent=63 // pred_region
          %474 = dma.done [#allocation7], 128
        $region72: #{tpu_custom_call.1} parent=63 // pred_fallthru
          _
        // Predicated region
        $region73: #{tpu_custom_call.1} parent=63 // pred_check
          %p475 = pneg %p115
        $region74: #{tpu_custom_call.1} parent=63 // pred_check_branch
          %477 = sbr.rel (%p475) target = $region76
        $region75: #{tpu_custom_call.1} parent=63 // pred_region
          %478 = dma.done [#allocation7], 1024
        $region76: #{tpu_custom_call.1} parent=63 // pred_fallthru
          _
        %s479 = sand.u32 %s233, 1
        %s480 = scalar_lea.sflag [#allocation10], %s479
        %s481 = sand.u32 %s233, 1
        %s482 = smul.addr %s481, 32
        %s483 = scalar_lea.vmem [#allocation9], %s482
        // Predicated region
        $region77: #{tpu_custom_call.1} parent=63 // pred_check
          %p484 = pneg %p246
        $region78: #{tpu_custom_call.1} parent=63 // pred_check_branch
          %486 = sbr.rel (%p484) target = $region80
        $region79: #{tpu_custom_call.1} parent=63 // pred_region
          %487 = dma.done %s480, 512
        $region80: #{tpu_custom_call.1} parent=63 // pred_fallthru
          _
        %p488 = pneg %p52
        %p489 = pneg %p49
        %p490 = pneg %p73
        %p491 = pneg %p70
        %p492 = pneg %p94
        %p493 = pneg %p91
        %p494 = pneg %p115
        %p495 = pneg %p112
        %p496 = pneg %p136
        %p497 = pneg %p133
        %p498 = pneg %p157
        %p499 = pneg %p154
        %p500 = pneg %p178
        %p501 = pneg %p175
        %p502 = pneg %p199
        %p503 = pneg %p196
        %p504 = pneg %p220
        %p505 = pneg %p217
        %s506 = sand.u32 %s233, 1
        %s507 = scalar_lea.sflag [#allocation10], %s506
        %s508 = sand.u32 %s233, 1
        %s509 = smul.addr %s508, 32
        %s510 = scalar_lea.vmem [#allocation9], %s509
        %p511 = pneg %p246
        %p512 = pneg %p243
        %p513 = scmp.lt.s32.totalorder %s36, 1
        %s514 = scalar_select %p513, %s36, 1
        %s515 = scalar_lea.vmem %s10, %s514
        %p516 = pneg %p272
        %p517 = pneg %p269
        %p518 = pneg %p298
        %p519 = pneg %p295
        %s520 = sand.u32 %s285, 1
        %s521 = scalar_lea.sflag [#allocation5], %s520
        %s522 = sand.u32 %s285, 1
        %s523 = smul.addr %s522, 8
        %s524 = scalar_lea.vmem [#allocation11], %s523
        %p525 = pneg %p319
        %p526 = pneg %p316
        %p527 = pneg %p340
        %p528 = pneg %p337
        %p529 = pneg %p361
        %p530 = pneg %p358
        %p531 = scmp.lt.s32.totalorder %s36, 1
        %s532 = scalar_select %p531, %s36, 1
        %s533 = scalar_lea.vmem %s10, %s532
        %p535 = scmp.eq.s32.totalorder %s36, 0
        // Predicated region
        $region81: #{tpu_custom_call.1} parent=63 // pred_check
          %p536 = pneg %p535
        $region82: #{tpu_custom_call.1} parent=63 // pred_check_branch
          %538 = sbr.rel (%p536) target = $region84
        $region83: #{tpu_custom_call.1} parent=63 // pred_region
          %v539 = vld [vmem:[%s0] sm:$0xff]
          %v540 = vld [vmem:[#allocation3] sm:$0xff]
          %v541 = vld [vmem:[#allocation6] sm:$0xff]
          %v542 = vld [vmem:[#allocation8] sm:$0xf]
          %v543 = vld [vmem:[#allocation8 + $0x4] sm:$0xf]
          %v544 = vld [vmem:[#allocation8 + $0x8] sm:$0xf]
          %v545 = vld [vmem:[#allocation8 + $0xc] sm:$0xf]
          %v546 = vld [vmem:[#allocation8 + $0x10] sm:$0xf]
          %v547 = vld [vmem:[#allocation8 + $0x14] sm:$0xf]
          %v548 = vld [vmem:[#allocation8 + $0x18] sm:$0xf]
          %v549 = vld [vmem:[#allocation8 + $0x1c] sm:$0xf]
          %v550 = vld [vmem:[#allocation8 + $0x20] sm:$0xf]
          %v551 = vld [vmem:[#allocation8 + $0x24] sm:$0xf]
          %v552 = vld [vmem:[#allocation8 + $0x28] sm:$0xf]
          %v553 = vld [vmem:[#allocation8 + $0x2c] sm:$0xf]
          %v554 = vld [vmem:[#allocation8 + $0x30] sm:$0xf]
          %v555 = vld [vmem:[#allocation8 + $0x34] sm:$0xf]
          %v556 = vld [vmem:[#allocation8 + $0x38] sm:$0xf]
          %v557 = vld [vmem:[#allocation8 + $0x3c] sm:$0xf]
          %v558 = vpack.c.bf16 %v540, %v540
          %v559 = vld [vmem:[%s4] sm:$0xf]
          %v560 = vld [vmem:[%s4 + $0x4] sm:$0xf]
          %v561 = vld [vmem:[%s4 + $0x8] sm:$0xf]
          %v562 = vld [vmem:[%s4 + $0xc] sm:$0xf]
          %v563 = vld [vmem:[%s4 + $0x10] sm:$0xf]
          %v564 = vld [vmem:[%s4 + $0x14] sm:$0xf]
          %v565 = vld [vmem:[%s4 + $0x18] sm:$0xf]
          %v566 = vld [vmem:[%s4 + $0x1c] sm:$0xf]
          %v583 = vunpack.c.l.b16 %v542
          %v584 = vunpack.c.l.b16 %v543
          %v585 = vunpack.c.l.b16 %v544
          %v586 = vunpack.c.l.b16 %v545
          %v587 = vunpack.c.l.b16 %v546
          %v588 = vunpack.c.l.b16 %v547
          %v589 = vunpack.c.l.b16 %v548
          %v590 = vunpack.c.l.b16 %v549
          %v591 = vunpack.c.l.b16 %v550
          %v592 = vunpack.c.l.b16 %v551
          %v593 = vunpack.c.l.b16 %v552
          %v594 = vunpack.c.l.b16 %v553
          %v595 = vunpack.c.l.b16 %v554
          %v596 = vunpack.c.l.b16 %v555
          %v597 = vunpack.c.l.b16 %v556
          %v598 = vunpack.c.l.b16 %v557
          %v599 = vpack.c.b16 %v584, %v583
          %v600 = vpack.c.b16 %v586, %v585
          %v601 = vpack.c.b16 %v588, %v587
          %v602 = vpack.c.b16 %v590, %v589
          %v603 = vpack.c.b16 %v592, %v591
          %v604 = vpack.c.b16 %v594, %v593
          %v605 = vpack.c.b16 %v596, %v595
          %v606 = vpack.c.b16 %v598, %v597
          %v615 = vunpack.c.l.b16 %v559
          %v616 = vunpack.c.l.b16 %v560
          %v617 = vunpack.c.l.b16 %v561
          %v618 = vunpack.c.l.b16 %v562
          %v619 = vunpack.c.l.b16 %v563
          %v620 = vunpack.c.l.b16 %v564
          %v621 = vunpack.c.l.b16 %v565
          %v622 = vunpack.c.l.b16 %v566
          %v623 = vpack.c.b16 %v616, %v615
          %v624 = vpack.c.b16 %v618, %v617
          %v625 = vpack.c.b16 %v620, %v619
          %v626 = vpack.c.b16 %v622, %v621
          %vm631 = vcmask 523264
          %v633 = vsel %vm631, %v599, 0
          %v636 = vsel %vm631, %v600, 0
          %v639 = vsel %vm631, %v601, 0
          %v642 = vsel %vm631, %v602, 0
          %v645 = vsel %vm631, %v603, 0
          %v648 = vsel %vm631, %v604, 0
          %v651 = vsel %vm631, %v605, 0
          %v654 = vsel %vm631, %v606, 0
          %656 = vmatprep.subr.bf16.mxu0 0
          %657 = vmatpush1.bf16.msra.mxu0 %v623
          %658 = vmatprep.subr.bf16.mxu0 0
          %659 = vmatpush1.bf16.msra.mxu0 %v624
          %660 = vmatprep.subr.bf16.mxu0 0
          %661 = vmatpush1.bf16.msra.mxu0 %v625
          %662 = vmatprep.subr.bf16.mxu0 0
          %663 = vmatpush1.bf16.msra.mxu0 %v626
          %664 = vmatprep.subr.bf16.mxu0 0
          %665 = vmatpush1.bf16.msra.mxu0 0
          %666 = vmatprep.subr.bf16.mxu0 0
          %667 = vmatpush1.bf16.msra.mxu0 0
          %668 = vmatprep.subr.bf16.mxu0 0
          %669 = vmatpush1.bf16.msra.mxu0 0
          %670 = vmatprep.subr.bf16.mxu0 0
          %671 = vmatpush1.bf16.msra.mxu0 0
          %672 = vmatprep.subr.bf16.mxu0 0
          %673 = vmatpush1.bf16.msra.mxu0 0
          %674 = vmatprep.subr.bf16.mxu0 0
          %675 = vmatpush1.bf16.msra.mxu0 0
          %676 = vmatprep.subr.bf16.mxu0 0
          %677 = vmatpush1.bf16.msra.mxu0 0
          %678 = vmatprep.subr.bf16.mxu0 0
          %679 = vmatpush1.bf16.msra.mxu0 0
          %680 = vmatprep.subr.bf16.mxu0 0
          %681 = vmatpush1.bf16.msra.mxu0 0
          %682 = vmatprep.subr.bf16.mxu0 0
          %683 = vmatpush1.bf16.msra.mxu0 0
          %684 = vmatprep.subr.bf16.mxu0 0
          %685 = vmatpush1.bf16.msra.mxu0 0
          %686 = vmatprep.subr.bf16.mxu0 0
          %687 = vmatpush1.bf16.msra.mxu0 0
          %688 = vmatprep.mubr.bf16.mxu0 0
          %689 = vmatmul.mubr.bf16.gmra.mrb[0].mxu0 %v633
          %v690 = vpop.f32.mrb[0].mxu0
          %v691 = vadd.f32 0.0, %v690
          %v692 = vpop.f32.mrb[0].mxu0
          %v693 = vpop.f32.mrb[0].mxu0
          %v694 = vadd.f32 0.0, %v693
          %v695 = vpop.f32.mrb[0].mxu0
          %696 = vmatprep.mubr.bf16.mxu0 0
          %697 = vmatmul.mubr.bf16.gmra.mrb[0].mxu0 %v636
          %v698 = vpop.f32.mrb[0].mxu0
          %v699 = vadd.f32 0.0, %v698
          %v700 = vpop.f32.mrb[0].mxu0
          %v701 = vpop.f32.mrb[0].mxu0
          %v702 = vadd.f32 0.0, %v701
          %v703 = vpop.f32.mrb[0].mxu0
          %704 = vmatprep.mubr.bf16.mxu0 0
          %705 = vmatmul.mubr.bf16.gmra.mrb[0].mxu0 %v639
          %v706 = vpop.f32.mrb[0].mxu0
          %v707 = vadd.f32 0.0, %v706
          %v708 = vpop.f32.mrb[0].mxu0
          %v709 = vpop.f32.mrb[0].mxu0
          %v710 = vadd.f32 0.0, %v709
          %v711 = vpop.f32.mrb[0].mxu0
          %712 = vmatprep.mubr.bf16.mxu0 0
          %713 = vmatmul.mubr.bf16.gmra.mrb[0].mxu0 %v642
          %v714 = vpop.f32.mrb[0].mxu0
          %v715 = vadd.f32 0.0, %v714
          %v716 = vpop.f32.mrb[0].mxu0
          %v717 = vpop.f32.mrb[0].mxu0
          %v718 = vadd.f32 0.0, %v717
          %v719 = vpop.f32.mrb[0].mxu0
          %720 = vmatprep.mubr.bf16.mxu0 0
          %721 = vmatmul.mubr.bf16.gmra.mrb[0].mxu0 %v645
          %v722 = vpop.f32.mrb[0].mxu0
          %v723 = vadd.f32 0.0, %v722
          %v724 = vpop.f32.mrb[0].mxu0
          %v725 = vpop.f32.mrb[0].mxu0
          %v726 = vadd.f32 0.0, %v725
          %v727 = vpop.f32.mrb[0].mxu0
          %728 = vmatprep.mubr.bf16.mxu0 0
          %729 = vmatmul.mubr.bf16.gmra.mrb[0].mxu0 %v648
          %v730 = vpop.f32.mrb[0].mxu0
          %v731 = vadd.f32 0.0, %v730
          %v732 = vpop.f32.mrb[0].mxu0
          %v733 = vpop.f32.mrb[0].mxu0
          %v734 = vadd.f32 0.0, %v733
          %v735 = vpop.f32.mrb[0].mxu0
          %736 = vmatprep.mubr.bf16.mxu0 0
          %737 = vmatmul.mubr.bf16.gmra.mrb[0].mxu0 %v651
          %v738 = vpop.f32.mrb[0].mxu0
          %v739 = vadd.f32 0.0, %v738
          %v740 = vpop.f32.mrb[0].mxu0
          %v741 = vpop.f32.mrb[0].mxu0
          %v742 = vadd.f32 0.0, %v741
          %v743 = vpop.f32.mrb[0].mxu0
          %744 = vmatprep.mubr.bf16.mxu0 0
          %745 = vmatmul.mubr.bf16.gmra.mrb[0].mxu0 %v654
          %v746 = vpop.f32.mrb[0].mxu0
          %v747 = vadd.f32 0.0, %v746
          %v748 = vpop.f32.mrb[0].mxu0
          %v749 = vpop.f32.mrb[0].mxu0
          %v750 = vadd.f32 0.0, %v749
          %v751 = vpop.f32.mrb[0].mxu0
          %752 = vdwg.mxu0
          %v753 = vld [vmem:[%s5] sm:$0xf]
          %v754 = vld [vmem:[%s5 + $0x4] sm:$0xf]
          %v755 = vld [vmem:[%s5 + $0x8] sm:$0xf]
          %v756 = vld [vmem:[%s5 + $0xc] sm:$0xf]
          %v757 = vld [vmem:[%s5 + $0x10] sm:$0xf]
          %v758 = vld [vmem:[%s5 + $0x14] sm:$0xf]
          %v759 = vld [vmem:[%s5 + $0x18] sm:$0xf]
          %v760 = vld [vmem:[%s5 + $0x1c] sm:$0xf]
          %v769 = vunpack.c.l.b16 %v753
          %v770 = vunpack.c.l.b16 %v754
          %v771 = vunpack.c.l.b16 %v755
          %v772 = vunpack.c.l.b16 %v756
          %v773 = vunpack.c.l.b16 %v757
          %v774 = vunpack.c.l.b16 %v758
          %v775 = vunpack.c.l.b16 %v759
          %v776 = vunpack.c.l.b16 %v760
          %v777 = vpack.c.b16 %v770, %v769
          %v778 = vpack.c.b16 %v772, %v771
          %v779 = vpack.c.b16 %v774, %v773
          %v780 = vpack.c.b16 %v776, %v775
          %v786 = vsel %vm631, %v558, 0
          %788 = vmatprep.subr.bf16.mxu0 0
          %789 = vmatpush1.bf16.msra.mxu0 %v777
          %790 = vmatprep.subr.bf16.mxu0 0
          %791 = vmatpush1.bf16.msra.mxu0 %v778
          %792 = vmatprep.subr.bf16.mxu0 0
          %793 = vmatpush1.bf16.msra.mxu0 %v779
          %794 = vmatprep.subr.bf16.mxu0 0
          %795 = vmatpush1.bf16.msra.mxu0 %v780
          %796 = vmatprep.subr.bf16.mxu0 0
          %797 = vmatpush1.bf16.msra.mxu0 0
          %798 = vmatprep.subr.bf16.mxu0 0
          %799 = vmatpush1.bf16.msra.mxu0 0
          %800 = vmatprep.subr.bf16.mxu0 0
          %801 = vmatpush1.bf16.msra.mxu0 0
          %802 = vmatprep.subr.bf16.mxu0 0
          %803 = vmatpush1.bf16.msra.mxu0 0
          %804 = vmatprep.subr.bf16.mxu0 0
          %805 = vmatpush1.bf16.msra.mxu0 0
          %806 = vmatprep.subr.bf16.mxu0 0
          %807 = vmatpush1.bf16.msra.mxu0 0
          %808 = vmatprep.subr.bf16.mxu0 0
          %809 = vmatpush1.bf16.msra.mxu0 0
          %810 = vmatprep.subr.bf16.mxu0 0
          %811 = vmatpush1.bf16.msra.mxu0 0
          %812 = vmatprep.subr.bf16.mxu0 0
          %813 = vmatpush1.bf16.msra.mxu0 0
          %814 = vmatprep.subr.bf16.mxu0 0
          %815 = vmatpush1.bf16.msra.mxu0 0
          %816 = vmatprep.subr.bf16.mxu0 0
          %817 = vmatpush1.bf16.msra.mxu0 0
          %818 = vmatprep.subr.bf16.mxu0 0
          %819 = vmatpush1.bf16.msra.mxu0 0
          %820 = vmatprep.mubr.bf16.mxu0 0
          %821 = vmatmul.mubr.bf16.gmra.mrb[0].mxu0 %v786
          %v822 = vpop.f32.mrb[0].mxu0
          %v823 = vadd.f32 0.0, %v822
          %v824 = vpop.f32.mrb[0].mxu0
          %v825 = vpop.f32.mrb[0].mxu0
          %v826 = vpop.f32.mrb[0].mxu0
          %827 = vdwg.mxu0
          %v829 = vcombine.high %v823, %v823
          %v831 = vunpack.c.l.s4 1966171168
          %v832 = vunpack.c.0.s8 %v831
          %v833 = vlaneseq
          %v834 = vshrl.u32 %v833, 7
          %v835 = vsub.s32 %v832, %v834
          %v836 = vrot.slane %v823, %v835
          %v838 = vunpack.c.l.s4 1966171168
          %v839 = vunpack.c.0.s8 %v838
          %v840 = vlaneseq
          %v841 = vshrl.u32 %v840, 7
          %v842 = vsub.s32 %v839, %v841
          %v843 = vrot.slane %v829, %v842
          %v844 = vcombine.high %v836, %v836
          %v845 = vcombine.high %v843, %v843
          %v847 = vunpack.c.l.s4 1966171168
          %v848 = vunpack.c.0.s8 %v847
          %v849 = vlaneseq
          %v850 = vshrl.u32 %v849, 7
          %v851 = vsub.s32 %v848, %v850
          %v852 = vrot.slane %v836, %v851
          %v854 = vunpack.c.l.s4 1966171168
          %v855 = vunpack.c.0.s8 %v854
          %v856 = vlaneseq
          %v857 = vshrl.u32 %v856, 7
          %v858 = vsub.s32 %v855, %v857
          %v859 = vrot.slane %v843, %v858
          %v861 = vunpack.c.l.s4 1966171168
          %v862 = vunpack.c.0.s8 %v861
          %v863 = vlaneseq
          %v864 = vshrl.u32 %v863, 7
          %v865 = vsub.s32 %v862, %v864
          %v866 = vrot.slane %v844, %v865
          %v868 = vunpack.c.l.s4 1966171168
          %v869 = vunpack.c.0.s8 %v868
          %v870 = vlaneseq
          %v871 = vshrl.u32 %v870, 7
          %v872 = vsub.s32 %v869, %v871
          %v873 = vrot.slane %v845, %v872
          %v874 = vcombine.high %v852, %v852
          %v875 = vcombine.high %v859, %v859
          %v876 = vcombine.high %v866, %v866
          %v877 = vcombine.high %v873, %v873
          %v878 = vlaneseq
          %v879 = vshrl.u32 %v878, 7
          %v880 = vsub.s32 0, %v879
          %v881 = vrot.slane %v852, %v880
          %v882 = vlaneseq
          %v883 = vshrl.u32 %v882, 7
          %v884 = vsub.s32 0, %v883
          %v885 = vrot.slane %v866, %v884
          %v886 = vlaneseq
          %v887 = vshrl.u32 %v886, 7
          %v888 = vsub.s32 0, %v887
          %v889 = vrot.slane %v874, %v888
          %v890 = vlaneseq
          %v891 = vshrl.u32 %v890, 7
          %v892 = vsub.s32 0, %v891
          %v893 = vrot.slane %v876, %v892
          %v894 = vlaneseq
          %v895 = vshrl.u32 %v894, 7
          %v896 = vsub.s32 0, %v895
          %v897 = vrot.slane %v859, %v896
          %v898 = vlaneseq
          %v899 = vshrl.u32 %v898, 7
          %v900 = vsub.s32 0, %v899
          %v901 = vrot.slane %v873, %v900
          %v902 = vlaneseq
          %v903 = vshrl.u32 %v902, 7
          %v904 = vsub.s32 0, %v903
          %v905 = vrot.slane %v875, %v904
          %v906 = vlaneseq
          %v907 = vshrl.u32 %v906, 7
          %v908 = vsub.s32 0, %v907
          %v909 = vrot.slane %v877, %v908
          %v918 = vadd.f32 %v691, %v881
          %v919 = vadd.f32 %v694, %v881
          %v920 = vadd.f32 %v699, %v885
          %v921 = vadd.f32 %v702, %v885
          %v922 = vadd.f32 %v707, %v889
          %v923 = vadd.f32 %v710, %v889
          %v924 = vadd.f32 %v715, %v893
          %v925 = vadd.f32 %v718, %v893
          %v926 = vadd.f32 %v723, %v897
          %v927 = vadd.f32 %v726, %v897
          %v928 = vadd.f32 %v731, %v901
          %v929 = vadd.f32 %v734, %v901
          %v930 = vadd.f32 %v739, %v905
          %v931 = vadd.f32 %v742, %v905
          %v932 = vadd.f32 %v747, %v909
          %v933 = vadd.f32 %v750, %v909
          %v934 = vtanh.pop %v918
          %v935 = vtanh.pop %v919
          %v936 = vtanh.pop %v920
          %v937 = vtanh.pop %v921
          %v938 = vtanh.pop %v922
          %v939 = vtanh.pop %v923
          %v940 = vtanh.pop %v924
          %v941 = vtanh.pop %v925
          %v942 = vtanh.pop %v926
          %v943 = vtanh.pop %v927
          %v944 = vtanh.pop %v928
          %v945 = vtanh.pop %v929
          %v946 = vtanh.pop %v930
          %v947 = vtanh.pop %v931
          %v948 = vtanh.pop %v932
          %v949 = vtanh.pop %v933
          %v950 = vld [vmem:[%s6] sm:$0xff]
          %v951 = vld [vmem:[%s6 + $0x8] sm:$0xff]
          %v952 = vld [vmem:[%s6 + $0x10] sm:$0xff]
          %v953 = vld [vmem:[%s6 + $0x18] sm:$0xff]
          %vm954 = vcmask 261120
          %v956 = vsel %vm954, %v934, 0
          %v959 = vsel %vm954, %v935, 0
          %v962 = vsel %vm954, %v936, 0
          %v965 = vsel %vm954, %v937, 0
          %v968 = vsel %vm954, %v938, 0
          %v971 = vsel %vm954, %v939, 0
          %v974 = vsel %vm954, %v940, 0
          %v977 = vsel %vm954, %v941, 0
          %v980 = vsel %vm954, %v942, 0
          %v983 = vsel %vm954, %v943, 0
          %v986 = vsel %vm954, %v944, 0
          %v989 = vsel %vm954, %v945, 0
          %v992 = vsel %vm954, %v946, 0
          %v995 = vsel %vm954, %v947, 0
          %v998 = vsel %vm954, %v948, 0
          %v1001 = vsel %vm954, %v949, 0
          %1003 = vmatprep.subr.mxu0 0.0
          %1004 = vmatpush1.msra.mxu0 %v950
          %1005 = vmatprep.subr.mxu0 0.0
          %1006 = vmatpush1.msra.mxu0 %v951
          %1007 = vmatprep.subr.mxu0 0.0
          %1008 = vmatpush1.msra.mxu0 %v952
          %1009 = vmatprep.subr.mxu0 0.0
          %1010 = vmatpush1.msra.mxu0 %v953
          %1011 = vmatprep.subr.mxu0 0.0
          %1012 = vmatpush1.msra.mxu0 0.0
          %1013 = vmatprep.subr.mxu0 0.0
          %1014 = vmatpush1.msra.mxu0 0.0
          %1015 = vmatprep.subr.mxu0 0.0
          %1016 = vmatpush1.msra.mxu0 0.0
          %1017 = vmatprep.subr.mxu0 0.0
          %1018 = vmatpush1.msra.mxu0 0.0
          %1019 = vmatprep.subr.mxu0 0.0
          %1020 = vmatpush1.msra.mxu0 0.0
          %1021 = vmatprep.subr.mxu0 0.0
          %1022 = vmatpush1.msra.mxu0 0.0
          %1023 = vmatprep.subr.mxu0 0.0
          %1024 = vmatpush1.msra.mxu0 0.0
          %1025 = vmatprep.subr.mxu0 0.0
          %1026 = vmatpush1.msra.mxu0 0.0
          %1027 = vmatprep.subr.mxu0 0.0
          %1028 = vmatpush1.msra.mxu0 0.0
          %1029 = vmatprep.subr.mxu0 0.0
          %1030 = vmatpush1.msra.mxu0 0.0
          %1031 = vmatprep.subr.mxu0 0.0
          %1032 = vmatpush1.msra.mxu0 0.0
          %1033 = vmatprep.subr.mxu0 0.0
          %1034 = vmatpush1.msra.mxu0 0.0
          %1035 = vmatprep.subr.mxu0 0.0
          %1036 = vmatpush1.msra.mxu0 0.0
          %1037 = vmatprep.subr.mxu0 0.0
          %1038 = vmatpush1.msra.mxu0 0.0
          %1039 = vmatprep.subr.mxu0 0.0
          %1040 = vmatpush1.msra.mxu0 0.0
          %1041 = vmatprep.subr.mxu0 0.0
          %1042 = vmatpush1.msra.mxu0 0.0
          %1043 = vmatprep.subr.mxu0 0.0
          %1044 = vmatpush1.msra.mxu0 0.0
          %1045 = vmatprep.subr.mxu0 0.0
          %1046 = vmatpush1.msra.mxu0 0.0
          %1047 = vmatprep.subr.mxu0 0.0
          %1048 = vmatpush1.msra.mxu0 0.0
          %1049 = vmatprep.subr.mxu0 0.0
          %1050 = vmatpush1.msra.mxu0 0.0
          %1051 = vmatprep.subr.mxu0 0.0
          %1052 = vmatpush1.msra.mxu0 0.0
          %1053 = vmatprep.subr.mxu0 0.0
          %1054 = vmatpush1.msra.mxu0 0.0
          %1055 = vmatprep.subr.mxu0 0.0
          %1056 = vmatpush1.msra.mxu0 0.0
          %1057 = vmatprep.subr.mxu0 0.0
          %1058 = vmatpush1.msra.mxu0 0.0
          %1059 = vmatprep.subr.mxu0 0.0
          %1060 = vmatpush1.msra.mxu0 0.0
          %1061 = vmatprep.subr.mxu0 0.0
          %1062 = vmatpush1.msra.mxu0 0.0
          %1063 = vmatprep.subr.mxu0 0.0
          %1064 = vmatpush1.msra.mxu0 0.0
          %1065 = vmatprep.subr.mxu0 0.0
          %1066 = vmatpush1.msra.mxu0 0.0
          %1067 = vmatprep.mubr.f32.mxu0 0.0
          %1068 = vmatmul.mubr.f32.gmra.mrb[0].mxu0 %v956
          %v1069 = vpop.f32.mrb[0].mxu0
          %v1070 = vadd.f32 0.0, %v1069
          %v1071 = vpop.f32.mrb[0].mxu0
          %1072 = vmatprep.mubr.f32.mxu0 0.0
          %1073 = vmatmul.mubr.f32.gmra.mrb[0].mxu0 %v959
          %v1074 = vpop.f32.mrb[0].mxu0
          %v1075 = vadd.f32 0.0, %v1074
          %v1076 = vpop.f32.mrb[0].mxu0
          %1077 = vmatprep.mubr.f32.mxu0 0.0
          %1078 = vmatmul.mubr.f32.gmra.mrb[0].mxu0 %v962
          %v1079 = vpop.f32.mrb[0].mxu0
          %v1080 = vadd.f32 0.0, %v1079
          %v1081 = vpop.f32.mrb[0].mxu0
          %1082 = vmatprep.mubr.f32.mxu0 0.0
          %1083 = vmatmul.mubr.f32.gmra.mrb[0].mxu0 %v965
          %v1084 = vpop.f32.mrb[0].mxu0
          %v1085 = vadd.f32 0.0, %v1084
          %v1086 = vpop.f32.mrb[0].mxu0
          %1087 = vmatprep.mubr.f32.mxu0 0.0
          %1088 = vmatmul.mubr.f32.gmra.mrb[0].mxu0 %v968
          %v1089 = vpop.f32.mrb[0].mxu0
          %v1090 = vadd.f32 0.0, %v1089
          %v1091 = vpop.f32.mrb[0].mxu0
          %1092 = vmatprep.mubr.f32.mxu0 0.0
          %1093 = vmatmul.mubr.f32.gmra.mrb[0].mxu0 %v971
          %v1094 = vpop.f32.mrb[0].mxu0
          %v1095 = vadd.f32 0.0, %v1094
          %v1096 = vpop.f32.mrb[0].mxu0
          %1097 = vmatprep.mubr.f32.mxu0 0.0
          %1098 = vmatmul.mubr.f32.gmra.mrb[0].mxu0 %v974
          %v1099 = vpop.f32.mrb[0].mxu0
          %v1100 = vadd.f32 0.0, %v1099
          %v1101 = vpop.f32.mrb[0].mxu0
          %1102 = vmatprep.mubr.f32.mxu0 0.0
          %1103 = vmatmul.mubr.f32.gmra.mrb[0].mxu0 %v977
          %v1104 = vpop.f32.mrb[0].mxu0
          %v1105 = vadd.f32 0.0, %v1104
          %v1106 = vpop.f32.mrb[0].mxu0
          %1107 = vmatprep.mubr.f32.mxu0 0.0
          %1108 = vmatmul.mubr.f32.gmra.mrb[0].mxu0 %v980
          %v1109 = vpop.f32.mrb[0].mxu0
          %v1110 = vadd.f32 0.0, %v1109
          %v1111 = vpop.f32.mrb[0].mxu0
          %1112 = vmatprep.mubr.f32.mxu0 0.0
          %1113 = vmatmul.mubr.f32.gmra.mrb[0].mxu0 %v983
          %v1114 = vpop.f32.mrb[0].mxu0
          %v1115 = vadd.f32 0.0, %v1114
          %v1116 = vpop.f32.mrb[0].mxu0
          %1117 = vmatprep.mubr.f32.mxu0 0.0
          %1118 = vmatmul.mubr.f32.gmra.mrb[0].mxu0 %v986
          %v1119 = vpop.f32.mrb[0].mxu0
          %v1120 = vadd.f32 0.0, %v1119
          %v1121 = vpop.f32.mrb[0].mxu0
          %1122 = vmatprep.mubr.f32.mxu0 0.0
          %1123 = vmatmul.mubr.f32.gmra.mrb[0].mxu0 %v989
          %v1124 = vpop.f32.mrb[0].mxu0
          %v1125 = vadd.f32 0.0, %v1124
          %v1126 = vpop.f32.mrb[0].mxu0
          %1127 = vmatprep.mubr.f32.mxu0 0.0
          %1128 = vmatmul.mubr.f32.gmra.mrb[0].mxu0 %v992
          %v1129 = vpop.f32.mrb[0].mxu0
          %v1130 = vadd.f32 0.0, %v1129
          %v1131 = vpop.f32.mrb[0].mxu0
          %1132 = vmatprep.mubr.f32.mxu0 0.0
          %1133 = vmatmul.mubr.f32.gmra.mrb[0].mxu0 %v995
          %v1134 = vpop.f32.mrb[0].mxu0
          %v1135 = vadd.f32 0.0, %v1134
          %v1136 = vpop.f32.mrb[0].mxu0
          %1137 = vmatprep.mubr.f32.mxu0 0.0
          %1138 = vmatmul.mubr.f32.gmra.mrb[0].mxu0 %v998
          %v1139 = vpop.f32.mrb[0].mxu0
          %v1140 = vadd.f32 0.0, %v1139
          %v1141 = vpop.f32.mrb[0].mxu0
          %1142 = vmatprep.mubr.f32.mxu0 0.0
          %1143 = vmatmul.mubr.f32.gmra.mrb[0].mxu0 %v1001
          %v1144 = vpop.f32.mrb[0].mxu0
          %v1145 = vadd.f32 0.0, %v1144
          %v1146 = vpop.f32.mrb[0].mxu0
          %1147 = vdwg.mxu0
          %1164 = vset.pattern.permute.xlu0 0
          %1165 = vperm.xlu0 %1164, %v1070
          %v1166 = vpop.permute.xlu0 %1165
          %1167 = vset.pattern.permute.xlu0 0
          %1168 = vperm.xlu0 %1167, %v1075
          %v1169 = vpop.permute.xlu0 %1168
          %1170 = vset.pattern.permute.xlu0 0
          %1171 = vperm.xlu0 %1170, %v1080
          %v1172 = vpop.permute.xlu0 %1171
          %1173 = vset.pattern.permute.xlu0 0
          %1174 = vperm.xlu0 %1173, %v1085
          %v1175 = vpop.permute.xlu0 %1174
          %1176 = vset.pattern.permute.xlu0 0
          %1177 = vperm.xlu0 %1176, %v1090
          %v1178 = vpop.permute.xlu0 %1177
          %1179 = vset.pattern.permute.xlu0 0
          %1180 = vperm.xlu0 %1179, %v1095
          %v1181 = vpop.permute.xlu0 %1180
          %1182 = vset.pattern.permute.xlu0 0
          %1183 = vperm.xlu0 %1182, %v1100
          %v1184 = vpop.permute.xlu0 %1183
          %1185 = vset.pattern.permute.xlu0 0
          %1186 = vperm.xlu0 %1185, %v1105
          %v1187 = vpop.permute.xlu0 %1186
          %1188 = vset.pattern.permute.xlu0 0
          %1189 = vperm.xlu0 %1188, %v1110
          %v1190 = vpop.permute.xlu0 %1189
          %1191 = vset.pattern.permute.xlu0 0
          %1192 = vperm.xlu0 %1191, %v1115
          %v1193 = vpop.permute.xlu0 %1192
          %1194 = vset.pattern.permute.xlu0 0
          %1195 = vperm.xlu0 %1194, %v1120
          %v1196 = vpop.permute.xlu0 %1195
          %1197 = vset.pattern.permute.xlu0 0
          %1198 = vperm.xlu0 %1197, %v1125
          %v1199 = vpop.permute.xlu0 %1198
          %1200 = vset.pattern.permute.xlu0 0
          %1201 = vperm.xlu0 %1200, %v1130
          %v1202 = vpop.permute.xlu0 %1201
          %1203 = vset.pattern.permute.xlu0 0
          %1204 = vperm.xlu0 %1203, %v1135
          %v1205 = vpop.permute.xlu0 %1204
          %1206 = vset.pattern.permute.xlu0 0
          %1207 = vperm.xlu0 %1206, %v1140
          %v1208 = vpop.permute.xlu0 %1207
          %1209 = vset.pattern.permute.xlu0 0
          %1210 = vperm.xlu0 %1209, %v1145
          %v1211 = vpop.permute.xlu0 %1210
          %v1212 = vlaneseq
          %v1213 = vand.u32 %v1212, 127
          %v1214 = vlaneseq
          %v1215 = vshrl.u32 %v1214, 7
          %v1216 = vsub.s32 %v1213, %v1215
          %v1217 = vrot.slane %v1166, %v1216
          %v1218 = vadd.s32 %v1213, 4294967288
          %v1219 = vlaneseq
          %v1220 = vshrl.u32 %v1219, 7
          %v1221 = vsub.s32 %v1218, %v1220
          %v1222 = vrot.slane %v1169, %v1221
          %vm1223 = vcmask 130112
          %v1224 = vsel %vm1223, %v1222, %v1217
          %v1225 = vlaneseq
          %v1226 = vshrl.u32 %v1225, 7
          %v1227 = vsub.s32 %v1213, %v1226
          %v1228 = vrot.slane %v1172, %v1227
          %v1229 = vlaneseq
          %v1230 = vshrl.u32 %v1229, 7
          %v1231 = vsub.s32 %v1218, %v1230
          %v1232 = vrot.slane %v1175, %v1231
          %v1233 = vsel %vm1223, %v1232, %v1228
          %v1234 = vlaneseq
          %v1235 = vshrl.u32 %v1234, 7
          %v1236 = vsub.s32 %v1213, %v1235
          %v1237 = vrot.slane %v1178, %v1236
          %v1238 = vlaneseq
          %v1239 = vshrl.u32 %v1238, 7
          %v1240 = vsub.s32 %v1218, %v1239
          %v1241 = vrot.slane %v1181, %v1240
          %v1242 = vsel %vm1223, %v1241, %v1237
          %v1243 = vlaneseq
          %v1244 = vshrl.u32 %v1243, 7
          %v1245 = vsub.s32 %v1213, %v1244
          %v1246 = vrot.slane %v1184, %v1245
          %v1247 = vlaneseq
          %v1248 = vshrl.u32 %v1247, 7
          %v1249 = vsub.s32 %v1218, %v1248
          %v1250 = vrot.slane %v1187, %v1249
          %v1251 = vsel %vm1223, %v1250, %v1246
          %v1252 = vlaneseq
          %v1253 = vshrl.u32 %v1252, 7
          %v1254 = vsub.s32 %v1213, %v1253
          %v1255 = vrot.slane %v1190, %v1254
          %v1256 = vlaneseq
          %v1257 = vshrl.u32 %v1256, 7
          %v1258 = vsub.s32 %v1218, %v1257
          %v1259 = vrot.slane %v1193, %v1258
          %v1260 = vsel %vm1223, %v1259, %v1255
          %v1261 = vlaneseq
          %v1262 = vshrl.u32 %v1261, 7
          %v1263 = vsub.s32 %v1213, %v1262
          %v1264 = vrot.slane %v1196, %v1263
          %v1265 = vlaneseq
          %v1266 = vshrl.u32 %v1265, 7
          %v1267 = vsub.s32 %v1218, %v1266
          %v1268 = vrot.slane %v1199, %v1267
          %v1269 = vsel %vm1223, %v1268, %v1264
          %v1270 = vlaneseq
          %v1271 = vshrl.u32 %v1270, 7
          %v1272 = vsub.s32 %v1213, %v1271
          %v1273 = vrot.slane %v1202, %v1272
          %v1274 = vlaneseq
          %v1275 = vshrl.u32 %v1274, 7
          %v1276 = vsub.s32 %v1218, %v1275
          %v1277 = vrot.slane %v1205, %v1276
          %v1278 = vsel %vm1223, %v1277, %v1273
          %v1279 = vlaneseq
          %v1280 = vshrl.u32 %v1279, 7
          %v1281 = vsub.s32 %v1213, %v1280
          %v1282 = vrot.slane %v1208, %v1281
          %v1283 = vlaneseq
          %v1284 = vshrl.u32 %v1283, 7
          %v1285 = vsub.s32 %v1218, %v1284
          %v1286 = vrot.slane %v1211, %v1285
          %v1287 = vsel %vm1223, %v1286, %v1282
          %vm1288 = vcmask 1041409
          %v1289 = vsel %vm1288, %v1233, %v1224
          %vm1290 = vcmask 1042434
          %v1291 = vsel %vm1290, %v1242, %v1289
          %vm1292 = vcmask 1043459
          %v1293 = vsel %vm1292, %v1251, %v1291
          %vm1294 = vcmask 1044484
          %v1295 = vsel %vm1294, %v1260, %v1293
          %vm1296 = vcmask 1045509
          %v1297 = vsel %vm1296, %v1269, %v1295
          %vm1298 = vcmask 1046534
          %v1299 = vsel %vm1298, %v1278, %v1297
          %vm1300 = vcmask 1047559
          %v1301 = vsel %vm1300, %v1287, %v1299
          %vm1303 = vcmask 130048
          %v1304 = vsel %vm1303, %v1301, -inf
          %1305 = vmax.xlane.f32.xlu0 %v1304
          %v1306 = vpop.xlane.xlu0 %1305
          %v1308 = vlaneseq
          %v1309 = vshrl.u32 %v1308, 7
          %v1310 = vsub.s32 0, %v1309
          %v1311 = vrot.slane %v1306, %v1310
          %v1312 = vlaneseq
          %v1313 = vshrl.u32 %v1312, 7
          %v1314 = vsub.s32 1, %v1313
          %v1315 = vrot.slane %v1306, %v1314
          %v1316 = vlaneseq
          %v1317 = vshrl.u32 %v1316, 7
          %v1318 = vsub.s32 2, %v1317
          %v1319 = vrot.slane %v1306, %v1318
          %v1320 = vlaneseq
          %v1321 = vshrl.u32 %v1320, 7
          %v1322 = vsub.s32 3, %v1321
          %v1323 = vrot.slane %v1306, %v1322
          %v1324 = vlaneseq
          %v1325 = vshrl.u32 %v1324, 7
          %v1326 = vsub.s32 4, %v1325
          %v1327 = vrot.slane %v1306, %v1326
          %v1328 = vlaneseq
          %v1329 = vshrl.u32 %v1328, 7
          %v1330 = vsub.s32 5, %v1329
          %v1331 = vrot.slane %v1306, %v1330
          %v1332 = vlaneseq
          %v1333 = vshrl.u32 %v1332, 7
          %v1334 = vsub.s32 6, %v1333
          %v1335 = vrot.slane %v1306, %v1334
          %v1336 = vlaneseq
          %v1337 = vshrl.u32 %v1336, 7
          %v1338 = vsub.s32 7, %v1337
          %v1339 = vrot.slane %v1306, %v1338
          %v1348 = vsub.f32 %v1070, %v1311
          %v1349 = vsub.f32 %v1075, %v1311
          %v1350 = vsub.f32 %v1080, %v1315
          %v1351 = vsub.f32 %v1085, %v1315
          %v1352 = vsub.f32 %v1090, %v1319
          %v1353 = vsub.f32 %v1095, %v1319
          %v1354 = vsub.f32 %v1100, %v1323
          %v1355 = vsub.f32 %v1105, %v1323
          %v1356 = vsub.f32 %v1110, %v1327
          %v1357 = vsub.f32 %v1115, %v1327
          %v1358 = vsub.f32 %v1120, %v1331
          %v1359 = vsub.f32 %v1125, %v1331
          %v1360 = vsub.f32 %v1130, %v1335
          %v1361 = vsub.f32 %v1135, %v1335
          %v1362 = vsub.f32 %v1140, %v1339
          %v1363 = vsub.f32 %v1145, %v1339
          %v1364 = vmul.f32 %v1348, 1.442695
          %v1365 = vpow.pop %v1364
          %v1366 = vmul.f32 %v1349, 1.442695
          %v1367 = vpow.pop %v1366
          %v1368 = vmul.f32 %v1350, 1.442695
          %v1369 = vpow.pop %v1368
          %v1370 = vmul.f32 %v1351, 1.442695
          %v1371 = vpow.pop %v1370
          %v1372 = vmul.f32 %v1352, 1.442695
          %v1373 = vpow.pop %v1372
          %v1374 = vmul.f32 %v1353, 1.442695
          %v1375 = vpow.pop %v1374
          %v1376 = vmul.f32 %v1354, 1.442695
          %v1377 = vpow.pop %v1376
          %v1378 = vmul.f32 %v1355, 1.442695
          %v1379 = vpow.pop %v1378
          %v1380 = vmul.f32 %v1356, 1.442695
          %v1381 = vpow.pop %v1380
          %v1382 = vmul.f32 %v1357, 1.442695
          %v1383 = vpow.pop %v1382
          %v1384 = vmul.f32 %v1358, 1.442695
          %v1385 = vpow.pop %v1384
          %v1386 = vmul.f32 %v1359, 1.442695
          %v1387 = vpow.pop %v1386
          %v1388 = vmul.f32 %v1360, 1.442695
          %v1389 = vpow.pop %v1388
          %v1390 = vmul.f32 %v1361, 1.442695
          %v1391 = vpow.pop %v1390
          %v1392 = vmul.f32 %v1362, 1.442695
          %v1393 = vpow.pop %v1392
          %v1394 = vmul.f32 %v1363, 1.442695
          %v1395 = vpow.pop %v1394
          %1412 = vset.pattern.permute.xlu0 0
          %1413 = vperm.xlu0 %1412, %v1365
          %v1414 = vpop.permute.xlu0 %1413
          %1415 = vset.pattern.permute.xlu0 0
          %1416 = vperm.xlu0 %1415, %v1367
          %v1417 = vpop.permute.xlu0 %1416
          %1418 = vset.pattern.permute.xlu0 0
          %1419 = vperm.xlu0 %1418, %v1369
          %v1420 = vpop.permute.xlu0 %1419
          %1421 = vset.pattern.permute.xlu0 0
          %1422 = vperm.xlu0 %1421, %v1371
          %v1423 = vpop.permute.xlu0 %1422
          %1424 = vset.pattern.permute.xlu0 0
          %1425 = vperm.xlu0 %1424, %v1373
          %v1426 = vpop.permute.xlu0 %1425
          %1427 = vset.pattern.permute.xlu0 0
          %1428 = vperm.xlu0 %1427, %v1375
          %v1429 = vpop.permute.xlu0 %1428
          %1430 = vset.pattern.permute.xlu0 0
          %1431 = vperm.xlu0 %1430, %v1377
          %v1432 = vpop.permute.xlu0 %1431
          %1433 = vset.pattern.permute.xlu0 0
          %1434 = vperm.xlu0 %1433, %v1379
          %v1435 = vpop.permute.xlu0 %1434
          %1436 = vset.pattern.permute.xlu0 0
          %1437 = vperm.xlu0 %1436, %v1381
          %v1438 = vpop.permute.xlu0 %1437
          %1439 = vset.pattern.permute.xlu0 0
          %1440 = vperm.xlu0 %1439, %v1383
          %v1441 = vpop.permute.xlu0 %1440
          %1442 = vset.pattern.permute.xlu0 0
          %1443 = vperm.xlu0 %1442, %v1385
          %v1444 = vpop.permute.xlu0 %1443
          %1445 = vset.pattern.permute.xlu0 0
          %1446 = vperm.xlu0 %1445, %v1387
          %v1447 = vpop.permute.xlu0 %1446
          %1448 = vset.pattern.permute.xlu0 0
          %1449 = vperm.xlu0 %1448, %v1389
          %v1450 = vpop.permute.xlu0 %1449
          %1451 = vset.pattern.permute.xlu0 0
          %1452 = vperm.xlu0 %1451, %v1391
          %v1453 = vpop.permute.xlu0 %1452
          %1454 = vset.pattern.permute.xlu0 0
          %1455 = vperm.xlu0 %1454, %v1393
          %v1456 = vpop.permute.xlu0 %1455
          %1457 = vset.pattern.permute.xlu0 0
          %1458 = vperm.xlu0 %1457, %v1395
          %v1459 = vpop.permute.xlu0 %1458
          %v1460 = vlaneseq
          %v1461 = vshrl.u32 %v1460, 7
          %v1462 = vsub.s32 %v1213, %v1461
          %v1463 = vrot.slane %v1414, %v1462
          %v1464 = vlaneseq
          %v1465 = vshrl.u32 %v1464, 7
          %v1466 = vsub.s32 %v1218, %v1465
          %v1467 = vrot.slane %v1417, %v1466
          %v1468 = vsel %vm1223, %v1467, %v1463
          %v1469 = vlaneseq
          %v1470 = vshrl.u32 %v1469, 7
          %v1471 = vsub.s32 %v1213, %v1470
          %v1472 = vrot.slane %v1420, %v1471
          %v1473 = vlaneseq
          %v1474 = vshrl.u32 %v1473, 7
          %v1475 = vsub.s32 %v1218, %v1474
          %v1476 = vrot.slane %v1423, %v1475
          %v1477 = vsel %vm1223, %v1476, %v1472
          %v1478 = vlaneseq
          %v1479 = vshrl.u32 %v1478, 7
          %v1480 = vsub.s32 %v1213, %v1479
          %v1481 = vrot.slane %v1426, %v1480
          %v1482 = vlaneseq
          %v1483 = vshrl.u32 %v1482, 7
          %v1484 = vsub.s32 %v1218, %v1483
          %v1485 = vrot.slane %v1429, %v1484
          %v1486 = vsel %vm1223, %v1485, %v1481
          %v1487 = vlaneseq
          %v1488 = vshrl.u32 %v1487, 7
          %v1489 = vsub.s32 %v1213, %v1488
          %v1490 = vrot.slane %v1432, %v1489
          %v1491 = vlaneseq
          %v1492 = vshrl.u32 %v1491, 7
          %v1493 = vsub.s32 %v1218, %v1492
          %v1494 = vrot.slane %v1435, %v1493
          %v1495 = vsel %vm1223, %v1494, %v1490
          %v1496 = vlaneseq
          %v1497 = vshrl.u32 %v1496, 7
          %v1498 = vsub.s32 %v1213, %v1497
          %v1499 = vrot.slane %v1438, %v1498
          %v1500 = vlaneseq
          %v1501 = vshrl.u32 %v1500, 7
          %v1502 = vsub.s32 %v1218, %v1501
          %v1503 = vrot.slane %v1441, %v1502
          %v1504 = vsel %vm1223, %v1503, %v1499
          %v1505 = vlaneseq
          %v1506 = vshrl.u32 %v1505, 7
          %v1507 = vsub.s32 %v1213, %v1506
          %v1508 = vrot.slane %v1444, %v1507
          %v1509 = vlaneseq
          %v1510 = vshrl.u32 %v1509, 7
          %v1511 = vsub.s32 %v1218, %v1510
          %v1512 = vrot.slane %v1447, %v1511
          %v1513 = vsel %vm1223, %v1512, %v1508
          %v1514 = vlaneseq
          %v1515 = vshrl.u32 %v1514, 7
          %v1516 = vsub.s32 %v1213, %v1515
          %v1517 = vrot.slane %v1450, %v1516
          %v1518 = vlaneseq
          %v1519 = vshrl.u32 %v1518, 7
          %v1520 = vsub.s32 %v1218, %v1519
          %v1521 = vrot.slane %v1453, %v1520
          %v1522 = vsel %vm1223, %v1521, %v1517
          %v1523 = vlaneseq
          %v1524 = vshrl.u32 %v1523, 7
          %v1525 = vsub.s32 %v1213, %v1524
          %v1526 = vrot.slane %v1456, %v1525
          %v1527 = vlaneseq
          %v1528 = vshrl.u32 %v1527, 7
          %v1529 = vsub.s32 %v1218, %v1528
          %v1530 = vrot.slane %v1459, %v1529
          %v1531 = vsel %vm1223, %v1530, %v1526
          %v1532 = vsel %vm1288, %v1477, %v1468
          %v1533 = vsel %vm1290, %v1486, %v1532
          %v1534 = vsel %vm1292, %v1495, %v1533
          %v1535 = vsel %vm1294, %v1504, %v1534
          %v1536 = vsel %vm1296, %v1513, %v1535
          %v1537 = vsel %vm1298, %v1522, %v1536
          %v1538 = vsel %vm1300, %v1531, %v1537
          %v1540 = vsel %vm1303, %v1538, 0.0
          %1541 = vadd.xlane.f32.xlu0 %v1540
          %v1542 = vpop.xlane.xlu0 %1541
          %v1543 = vrcp.pop %v1542
          %v1545 = vlaneseq
          %v1546 = vshrl.u32 %v1545, 7
          %v1547 = vsub.s32 0, %v1546
          %v1548 = vrot.slane %v1543, %v1547
          %v1549 = vlaneseq
          %v1550 = vshrl.u32 %v1549, 7
          %v1551 = vsub.s32 1, %v1550
          %v1552 = vrot.slane %v1543, %v1551
          %v1553 = vlaneseq
          %v1554 = vshrl.u32 %v1553, 7
          %v1555 = vsub.s32 2, %v1554
          %v1556 = vrot.slane %v1543, %v1555
          %v1557 = vlaneseq
          %v1558 = vshrl.u32 %v1557, 7
          %v1559 = vsub.s32 3, %v1558
          %v1560 = vrot.slane %v1543, %v1559
          %v1561 = vlaneseq
          %v1562 = vshrl.u32 %v1561, 7
          %v1563 = vsub.s32 4, %v1562
          %v1564 = vrot.slane %v1543, %v1563
          %v1565 = vlaneseq
          %v1566 = vshrl.u32 %v1565, 7
          %v1567 = vsub.s32 5, %v1566
          %v1568 = vrot.slane %v1543, %v1567
          %v1569 = vlaneseq
          %v1570 = vshrl.u32 %v1569, 7
          %v1571 = vsub.s32 6, %v1570
          %v1572 = vrot.slane %v1543, %v1571
          %v1573 = vlaneseq
          %v1574 = vshrl.u32 %v1573, 7
          %v1575 = vsub.s32 7, %v1574
          %v1576 = vrot.slane %v1543, %v1575
          %v1585 = vmul.f32 %v1365, %v1548
          %v1586 = vmul.f32 %v1367, %v1548
          %v1587 = vmul.f32 %v1369, %v1552
          %v1588 = vmul.f32 %v1371, %v1552
          %v1589 = vmul.f32 %v1373, %v1556
          %v1590 = vmul.f32 %v1375, %v1556
          %v1591 = vmul.f32 %v1377, %v1560
          %v1592 = vmul.f32 %v1379, %v1560
          %v1593 = vmul.f32 %v1381, %v1564
          %v1594 = vmul.f32 %v1383, %v1564
          %v1595 = vmul.f32 %v1385, %v1568
          %v1596 = vmul.f32 %v1387, %v1568
          %v1597 = vmul.f32 %v1389, %v1572
          %v1598 = vmul.f32 %v1391, %v1572
          %v1599 = vmul.f32 %v1393, %v1576
          %v1600 = vmul.f32 %v1395, %v1576
          %1617 = vset.pattern.permute.xlu0 0
          %1618 = vperm.xlu0 %1617, %v1585
          %v1619 = vpop.permute.xlu0 %1618
          %1620 = vset.pattern.permute.xlu0 0
          %1621 = vperm.xlu0 %1620, %v1586
          %v1622 = vpop.permute.xlu0 %1621
          %1623 = vset.pattern.permute.xlu0 0
          %1624 = vperm.xlu0 %1623, %v1587
          %v1625 = vpop.permute.xlu0 %1624
          %1626 = vset.pattern.permute.xlu0 0
          %1627 = vperm.xlu0 %1626, %v1588
          %v1628 = vpop.permute.xlu0 %1627
          %1629 = vset.pattern.permute.xlu0 0
          %1630 = vperm.xlu0 %1629, %v1589
          %v1631 = vpop.permute.xlu0 %1630
          %1632 = vset.pattern.permute.xlu0 0
          %1633 = vperm.xlu0 %1632, %v1590
          %v1634 = vpop.permute.xlu0 %1633
          %1635 = vset.pattern.permute.xlu0 0
          %1636 = vperm.xlu0 %1635, %v1591
          %v1637 = vpop.permute.xlu0 %1636
          %1638 = vset.pattern.permute.xlu0 0
          %1639 = vperm.xlu0 %1638, %v1592
          %v1640 = vpop.permute.xlu0 %1639
          %1641 = vset.pattern.permute.xlu0 0
          %1642 = vperm.xlu0 %1641, %v1593
          %v1643 = vpop.permute.xlu0 %1642
          %1644 = vset.pattern.permute.xlu0 0
          %1645 = vperm.xlu0 %1644, %v1594
          %v1646 = vpop.permute.xlu0 %1645
          %1647 = vset.pattern.permute.xlu0 0
          %1648 = vperm.xlu0 %1647, %v1595
          %v1649 = vpop.permute.xlu0 %1648
          %1650 = vset.pattern.permute.xlu0 0
          %1651 = vperm.xlu0 %1650, %v1596
          %v1652 = vpop.permute.xlu0 %1651
          %1653 = vset.pattern.permute.xlu0 0
          %1654 = vperm.xlu0 %1653, %v1597
          %v1655 = vpop.permute.xlu0 %1654
          %1656 = vset.pattern.permute.xlu0 0
          %1657 = vperm.xlu0 %1656, %v1598
          %v1658 = vpop.permute.xlu0 %1657
          %1659 = vset.pattern.permute.xlu0 0
          %1660 = vperm.xlu0 %1659, %v1599
          %v1661 = vpop.permute.xlu0 %1660
          %1662 = vset.pattern.permute.xlu0 0
          %1663 = vperm.xlu0 %1662, %v1600
          %v1664 = vpop.permute.xlu0 %1663
          %v1665 = vlaneseq
          %v1666 = vshrl.u32 %v1665, 7
          %v1667 = vsub.s32 %v1213, %v1666
          %v1668 = vrot.slane %v1619, %v1667
          %v1669 = vlaneseq
          %v1670 = vshrl.u32 %v1669, 7
          %v1671 = vsub.s32 %v1218, %v1670
          %v1672 = vrot.slane %v1622, %v1671
          %v1673 = vsel %vm1223, %v1672, %v1668
          %v1674 = vlaneseq
          %v1675 = vshrl.u32 %v1674, 7
          %v1676 = vsub.s32 %v1213, %v1675
          %v1677 = vrot.slane %v1625, %v1676
          %v1678 = vlaneseq
          %v1679 = vshrl.u32 %v1678, 7
          %v1680 = vsub.s32 %v1218, %v1679
          %v1681 = vrot.slane %v1628, %v1680
          %v1682 = vsel %vm1223, %v1681, %v1677
          %v1683 = vlaneseq
          %v1684 = vshrl.u32 %v1683, 7
          %v1685 = vsub.s32 %v1213, %v1684
          %v1686 = vrot.slane %v1631, %v1685
          %v1687 = vlaneseq
          %v1688 = vshrl.u32 %v1687, 7
          %v1689 = vsub.s32 %v1218, %v1688
          %v1690 = vrot.slane %v1634, %v1689
          %v1691 = vsel %vm1223, %v1690, %v1686
          %v1692 = vlaneseq
          %v1693 = vshrl.u32 %v1692, 7
          %v1694 = vsub.s32 %v1213, %v1693
          %v1695 = vrot.slane %v1637, %v1694
          %v1696 = vlaneseq
          %v1697 = vshrl.u32 %v1696, 7
          %v1698 = vsub.s32 %v1218, %v1697
          %v1699 = vrot.slane %v1640, %v1698
          %v1700 = vsel %vm1223, %v1699, %v1695
          %v1701 = vlaneseq
          %v1702 = vshrl.u32 %v1701, 7
          %v1703 = vsub.s32 %v1213, %v1702
          %v1704 = vrot.slane %v1643, %v1703
          %v1705 = vlaneseq
          %v1706 = vshrl.u32 %v1705, 7
          %v1707 = vsub.s32 %v1218, %v1706
          %v1708 = vrot.slane %v1646, %v1707
          %v1709 = vsel %vm1223, %v1708, %v1704
          %v1710 = vlaneseq
          %v1711 = vshrl.u32 %v1710, 7
          %v1712 = vsub.s32 %v1213, %v1711
          %v1713 = vrot.slane %v1649, %v1712
          %v1714 = vlaneseq
          %v1715 = vshrl.u32 %v1714, 7
          %v1716 = vsub.s32 %v1218, %v1715
          %v1717 = vrot.slane %v1652, %v1716
          %v1718 = vsel %vm1223, %v1717, %v1713
          %v1719 = vlaneseq
          %v1720 = vshrl.u32 %v1719, 7
          %v1721 = vsub.s32 %v1213, %v1720
          %v1722 = vrot.slane %v1655, %v1721
          %v1723 = vlaneseq
          %v1724 = vshrl.u32 %v1723, 7
          %v1725 = vsub.s32 %v1218, %v1724
          %v1726 = vrot.slane %v1658, %v1725
          %v1727 = vsel %vm1223, %v1726, %v1722
          %v1728 = vlaneseq
          %v1729 = vshrl.u32 %v1728, 7
          %v1730 = vsub.s32 %v1213, %v1729
          %v1731 = vrot.slane %v1661, %v1730
          %v1732 = vlaneseq
          %v1733 = vshrl.u32 %v1732, 7
          %v1734 = vsub.s32 %v1218, %v1733
          %v1735 = vrot.slane %v1664, %v1734
          %v1736 = vsel %vm1223, %v1735, %v1731
          %v1737 = vsel %vm1288, %v1682, %v1673
          %v1738 = vsel %vm1290, %v1691, %v1737
          %v1739 = vsel %vm1292, %v1700, %v1738
          %v1740 = vsel %vm1294, %v1709, %v1739
          %v1741 = vsel %vm1296, %v1718, %v1740
          %v1742 = vsel %vm1298, %v1727, %v1741
          %v1743 = vsel %vm1300, %v1736, %v1742
          %1745 = vst.msk [vmem:[#allocation15] sm:$0xff] %vm1303, %v1743
          %v1746 = vpack.c.bf16 %v1586, %v1585
          %v1747 = vpack.c.bf16 %v1588, %v1587
          %v1748 = vpack.c.bf16 %v1590, %v1589
          %v1749 = vpack.c.bf16 %v1592, %v1591
          %v1750 = vpack.c.bf16 %v1594, %v1593
          %v1751 = vpack.c.bf16 %v1596, %v1595
          %v1752 = vpack.c.bf16 %v1598, %v1597
          %v1753 = vpack.c.bf16 %v1600, %v1599
          %v1755 = vunpack.c.l.b16 %v1746
          %v1756 = vunpack.c.h.b16 %v1746
          %1757 = vset.pattern.permute.xlu0 0
          %1758 = vperm.xlu0 %1757, %v1755
          %v1759 = vpop.permute.xlu0 %1758
          %1760 = vset.pattern.permute.xlu0 0
          %1761 = vperm.xlu0 %1760, %v1756
          %v1762 = vpop.permute.xlu0 %1761
          %v1763 = vlaneseq
          %v1764 = vshrl.u32 %v1763, 7
          %v1765 = vsub.s32 %v1213, %v1764
          %v1766 = vrot.slane %v1759, %v1765
          %v1767 = vlaneseq
          %v1768 = vshrl.u32 %v1767, 7
          %v1769 = vsub.s32 %v1218, %v1768
          %v1770 = vrot.slane %v1762, %v1769
          %v1771 = vsel %vm1223, %v1770, %v1766
          %v1772 = vpack.c.b16 %v1771, %v1771
          %v1775 = vsel %vm1303, %v1772, 0
          %1777 = vmatprep.subr.bf16.mxu0 0
          %1778 = vmatpush1.bf16.msra.mxu0 %v599
          %1779 = vmatprep.subr.bf16.mxu0 0
          %1780 = vmatpush1.bf16.msra.mxu0 0
          %1781 = vmatprep.subr.bf16.mxu0 0
          %1782 = vmatpush1.bf16.msra.mxu0 0
          %1783 = vmatprep.subr.bf16.mxu0 0
          %1784 = vmatpush1.bf16.msra.mxu0 0
          %1785 = vmatprep.subr.bf16.mxu0 0
          %1786 = vmatpush1.bf16.msra.mxu0 0
          %1787 = vmatprep.subr.bf16.mxu0 0
          %1788 = vmatpush1.bf16.msra.mxu0 0
          %1789 = vmatprep.subr.bf16.mxu0 0
          %1790 = vmatpush1.bf16.msra.mxu0 0
          %1791 = vmatprep.subr.bf16.mxu0 0
          %1792 = vmatpush1.bf16.msra.mxu0 0
          %1793 = vmatprep.subr.bf16.mxu0 0
          %1794 = vmatpush1.bf16.msra.mxu0 0
          %1795 = vmatprep.subr.bf16.mxu0 0
          %1796 = vmatpush1.bf16.msra.mxu0 0
          %1797 = vmatprep.subr.bf16.mxu0 0
          %1798 = vmatpush1.bf16.msra.mxu0 0
          %1799 = vmatprep.subr.bf16.mxu0 0
          %1800 = vmatpush1.bf16.msra.mxu0 0
          %1801 = vmatprep.subr.bf16.mxu0 0
          %1802 = vmatpush1.bf16.msra.mxu0 0
          %1803 = vmatprep.subr.bf16.mxu0 0
          %1804 = vmatpush1.bf16.msra.mxu0 0
          %1805 = vmatprep.subr.bf16.mxu0 0
          %1806 = vmatpush1.bf16.msra.mxu0 0
          %1807 = vmatprep.subr.bf16.mxu0 0
          %1808 = vmatpush1.bf16.msra.mxu0 0
          %1809 = vmatprep.mubr.bf16.mxu0 0
          %1810 = vmatmul.mubr.bf16.gmra.mrb[0].mxu0 %v1775
          %v1811 = vpop.f32.mrb[0].mxu0
          %v1812 = vadd.f32 0.0, %v1811
          %v1813 = vpop.f32.mrb[0].mxu0
          %v1814 = vpop.f32.mrb[0].mxu0
          %v1815 = vpop.f32.mrb[0].mxu0
          %1816 = vdwg.mxu0
          %v1818 = vunpack.c.l.b16 %v1747
          %v1819 = vunpack.c.h.b16 %v1747
          %1820 = vset.pattern.permute.xlu0 0
          %1821 = vperm.xlu0 %1820, %v1818
          %v1822 = vpop.permute.xlu0 %1821
          %1823 = vset.pattern.permute.xlu0 0
          %1824 = vperm.xlu0 %1823, %v1819
          %v1825 = vpop.permute.xlu0 %1824
          %v1826 = vlaneseq
          %v1827 = vshrl.u32 %v1826, 7
          %v1828 = vsub.s32 %v1213, %v1827
          %v1829 = vrot.slane %v1822, %v1828
          %v1830 = vlaneseq
          %v1831 = vshrl.u32 %v1830, 7
          %v1832 = vsub.s32 %v1218, %v1831
          %v1833 = vrot.slane %v1825, %v1832
          %v1834 = vsel %vm1223, %v1833, %v1829
          %v1835 = vpack.c.b16 %v1834, %v1834
          %v1838 = vsel %vm1303, %v1835, 0
          %1840 = vmatprep.subr.bf16.mxu0 0
          %1841 = vmatpush1.bf16.msra.mxu0 %v600
          %1842 = vmatprep.subr.bf16.mxu0 0
          %1843 = vmatpush1.bf16.msra.mxu0 0
          %1844 = vmatprep.subr.bf16.mxu0 0
          %1845 = vmatpush1.bf16.msra.mxu0 0
          %1846 = vmatprep.subr.bf16.mxu0 0
          %1847 = vmatpush1.bf16.msra.mxu0 0
          %1848 = vmatprep.subr.bf16.mxu0 0
          %1849 = vmatpush1.bf16.msra.mxu0 0
          %1850 = vmatprep.subr.bf16.mxu0 0
          %1851 = vmatpush1.bf16.msra.mxu0 0
          %1852 = vmatprep.subr.bf16.mxu0 0
          %1853 = vmatpush1.bf16.msra.mxu0 0
          %1854 = vmatprep.subr.bf16.mxu0 0
          %1855 = vmatpush1.bf16.msra.mxu0 0
          %1856 = vmatprep.subr.bf16.mxu0 0
          %1857 = vmatpush1.bf16.msra.mxu0 0
          %1858 = vmatprep.subr.bf16.mxu0 0
          %1859 = vmatpush1.bf16.msra.mxu0 0
          %1860 = vmatprep.subr.bf16.mxu0 0
          %1861 = vmatpush1.bf16.msra.mxu0 0
          %1862 = vmatprep.subr.bf16.mxu0 0
          %1863 = vmatpush1.bf16.msra.mxu0 0
          %1864 = vmatprep.subr.bf16.mxu0 0
          %1865 = vmatpush1.bf16.msra.mxu0 0
          %1866 = vmatprep.subr.bf16.mxu0 0
          %1867 = vmatpush1.bf16.msra.mxu0 0
          %1868 = vmatprep.subr.bf16.mxu0 0
          %1869 = vmatpush1.bf16.msra.mxu0 0
          %1870 = vmatprep.subr.bf16.mxu0 0
          %1871 = vmatpush1.bf16.msra.mxu0 0
          %1872 = vmatprep.mubr.bf16.mxu0 0
          %1873 = vmatmul.mubr.bf16.gmra.mrb[0].mxu0 %v1838
          %v1874 = vpop.f32.mrb[0].mxu0
          %v1875 = vadd.f32 0.0, %v1874
          %v1876 = vpop.f32.mrb[0].mxu0
          %v1877 = vpop.f32.mrb[0].mxu0
          %v1878 = vpop.f32.mrb[0].mxu0
          %1879 = vdwg.mxu0
          %v1881 = vunpack.c.l.b16 %v1748
          %v1882 = vunpack.c.h.b16 %v1748
          %1883 = vset.pattern.permute.xlu0 0
          %1884 = vperm.xlu0 %1883, %v1881
          %v1885 = vpop.permute.xlu0 %1884
          %1886 = vset.pattern.permute.xlu0 0
          %1887 = vperm.xlu0 %1886, %v1882
          %v1888 = vpop.permute.xlu0 %1887
          %v1889 = vlaneseq
          %v1890 = vshrl.u32 %v1889, 7
          %v1891 = vsub.s32 %v1213, %v1890
          %v1892 = vrot.slane %v1885, %v1891
          %v1893 = vlaneseq
          %v1894 = vshrl.u32 %v1893, 7
          %v1895 = vsub.s32 %v1218, %v1894
          %v1896 = vrot.slane %v1888, %v1895
          %v1897 = vsel %vm1223, %v1896, %v1892
          %v1898 = vpack.c.b16 %v1897, %v1897
          %v1901 = vsel %vm1303, %v1898, 0
          %1903 = vmatprep.subr.bf16.mxu0 0
          %1904 = vmatpush1.bf16.msra.mxu0 %v601
          %1905 = vmatprep.subr.bf16.mxu0 0
          %1906 = vmatpush1.bf16.msra.mxu0 0
          %1907 = vmatprep.subr.bf16.mxu0 0
          %1908 = vmatpush1.bf16.msra.mxu0 0
          %1909 = vmatprep.subr.bf16.mxu0 0
          %1910 = vmatpush1.bf16.msra.mxu0 0
          %1911 = vmatprep.subr.bf16.mxu0 0
          %1912 = vmatpush1.bf16.msra.mxu0 0
          %1913 = vmatprep.subr.bf16.mxu0 0
          %1914 = vmatpush1.bf16.msra.mxu0 0
          %1915 = vmatprep.subr.bf16.mxu0 0
          %1916 = vmatpush1.bf16.msra.mxu0 0
          %1917 = vmatprep.subr.bf16.mxu0 0
          %1918 = vmatpush1.bf16.msra.mxu0 0
          %1919 = vmatprep.subr.bf16.mxu0 0
          %1920 = vmatpush1.bf16.msra.mxu0 0
          %1921 = vmatprep.subr.bf16.mxu0 0
          %1922 = vmatpush1.bf16.msra.mxu0 0
          %1923 = vmatprep.subr.bf16.mxu0 0
          %1924 = vmatpush1.bf16.msra.mxu0 0
          %1925 = vmatprep.subr.bf16.mxu0 0
          %1926 = vmatpush1.bf16.msra.mxu0 0
          %1927 = vmatprep.subr.bf16.mxu0 0
          %1928 = vmatpush1.bf16.msra.mxu0 0
          %1929 = vmatprep.subr.bf16.mxu0 0
          %1930 = vmatpush1.bf16.msra.mxu0 0
          %1931 = vmatprep.subr.bf16.mxu0 0
          %1932 = vmatpush1.bf16.msra.mxu0 0
          %1933 = vmatprep.subr.bf16.mxu0 0
          %1934 = vmatpush1.bf16.msra.mxu0 0
          %1935 = vmatprep.mubr.bf16.mxu0 0
          %1936 = vmatmul.mubr.bf16.gmra.mrb[0].mxu0 %v1901
          %v1937 = vpop.f32.mrb[0].mxu0
          %v1938 = vadd.f32 0.0, %v1937
          %v1939 = vpop.f32.mrb[0].mxu0
          %v1940 = vpop.f32.mrb[0].mxu0
          %v1941 = vpop.f32.mrb[0].mxu0
          %1942 = vdwg.mxu0
          %v1944 = vunpack.c.l.b16 %v1749
          %v1945 = vunpack.c.h.b16 %v1749
          %1946 = vset.pattern.permute.xlu0 0
          %1947 = vperm.xlu0 %1946, %v1944
          %v1948 = vpop.permute.xlu0 %1947
          %1949 = vset.pattern.permute.xlu0 0
          %1950 = vperm.xlu0 %1949, %v1945
          %v1951 = vpop.permute.xlu0 %1950
          %v1952 = vlaneseq
          %v1953 = vshrl.u32 %v1952, 7
          %v1954 = vsub.s32 %v1213, %v1953
          %v1955 = vrot.slane %v1948, %v1954
          %v1956 = vlaneseq
          %v1957 = vshrl.u32 %v1956, 7
          %v1958 = vsub.s32 %v1218, %v1957
          %v1959 = vrot.slane %v1951, %v1958
          %v1960 = vsel %vm1223, %v1959, %v1955
          %v1961 = vpack.c.b16 %v1960, %v1960
          %v1964 = vsel %vm1303, %v1961, 0
          %1966 = vmatprep.subr.bf16.mxu0 0
          %1967 = vmatpush1.bf16.msra.mxu0 %v602
          %1968 = vmatprep.subr.bf16.mxu0 0
          %1969 = vmatpush1.bf16.msra.mxu0 0
          %1970 = vmatprep.subr.bf16.mxu0 0
          %1971 = vmatpush1.bf16.msra.mxu0 0
          %1972 = vmatprep.subr.bf16.mxu0 0
          %1973 = vmatpush1.bf16.msra.mxu0 0
          %1974 = vmatprep.subr.bf16.mxu0 0
          %1975 = vmatpush1.bf16.msra.mxu0 0
          %1976 = vmatprep.subr.bf16.mxu0 0
          %1977 = vmatpush1.bf16.msra.mxu0 0
          %1978 = vmatprep.subr.bf16.mxu0 0
          %1979 = vmatpush1.bf16.msra.mxu0 0
          %1980 = vmatprep.subr.bf16.mxu0 0
          %1981 = vmatpush1.bf16.msra.mxu0 0
          %1982 = vmatprep.subr.bf16.mxu0 0
          %1983 = vmatpush1.bf16.msra.mxu0 0
          %1984 = vmatprep.subr.bf16.mxu0 0
          %1985 = vmatpush1.bf16.msra.mxu0 0
          %1986 = vmatprep.subr.bf16.mxu0 0
          %1987 = vmatpush1.bf16.msra.mxu0 0
          %1988 = vmatprep.subr.bf16.mxu0 0
          %1989 = vmatpush1.bf16.msra.mxu0 0
          %1990 = vmatprep.subr.bf16.mxu0 0
          %1991 = vmatpush1.bf16.msra.mxu0 0
          %1992 = vmatprep.subr.bf16.mxu0 0
          %1993 = vmatpush1.bf16.msra.mxu0 0
          %1994 = vmatprep.subr.bf16.mxu0 0
          %1995 = vmatpush1.bf16.msra.mxu0 0
          %1996 = vmatprep.subr.bf16.mxu0 0
          %1997 = vmatpush1.bf16.msra.mxu0 0
          %1998 = vmatprep.mubr.bf16.mxu0 0
          %1999 = vmatmul.mubr.bf16.gmra.mrb[0].mxu0 %v1964
          %v2000 = vpop.f32.mrb[0].mxu0
          %v2001 = vadd.f32 0.0, %v2000
          %v2002 = vpop.f32.mrb[0].mxu0
          %v2003 = vpop.f32.mrb[0].mxu0
          %v2004 = vpop.f32.mrb[0].mxu0
          %2005 = vdwg.mxu0
          %v2007 = vunpack.c.l.b16 %v1750
          %v2008 = vunpack.c.h.b16 %v1750
          %2009 = vset.pattern.permute.xlu0 0
          %2010 = vperm.xlu0 %2009, %v2007
          %v2011 = vpop.permute.xlu0 %2010
          %2012 = vset.pattern.permute.xlu0 0
          %2013 = vperm.xlu0 %2012, %v2008
          %v2014 = vpop.permute.xlu0 %2013
          %v2015 = vlaneseq
          %v2016 = vshrl.u32 %v2015, 7
          %v2017 = vsub.s32 %v1213, %v2016
          %v2018 = vrot.slane %v2011, %v2017
          %v2019 = vlaneseq
          %v2020 = vshrl.u32 %v2019, 7
          %v2021 = vsub.s32 %v1218, %v2020
          %v2022 = vrot.slane %v2014, %v2021
          %v2023 = vsel %vm1223, %v2022, %v2018
          %v2024 = vpack.c.b16 %v2023, %v2023
          %v2027 = vsel %vm1303, %v2024, 0
          %2029 = vmatprep.subr.bf16.mxu0 0
          %2030 = vmatpush1.bf16.msra.mxu0 %v603
          %2031 = vmatprep.subr.bf16.mxu0 0
          %2032 = vmatpush1.bf16.msra.mxu0 0
          %2033 = vmatprep.subr.bf16.mxu0 0
          %2034 = vmatpush1.bf16.msra.mxu0 0
          %2035 = vmatprep.subr.bf16.mxu0 0
          %2036 = vmatpush1.bf16.msra.mxu0 0
          %2037 = vmatprep.subr.bf16.mxu0 0
          %2038 = vmatpush1.bf16.msra.mxu0 0
          %2039 = vmatprep.subr.bf16.mxu0 0
          %2040 = vmatpush1.bf16.msra.mxu0 0
          %2041 = vmatprep.subr.bf16.mxu0 0
          %2042 = vmatpush1.bf16.msra.mxu0 0
          %2043 = vmatprep.subr.bf16.mxu0 0
          %2044 = vmatpush1.bf16.msra.mxu0 0
          %2045 = vmatprep.subr.bf16.mxu0 0
          %2046 = vmatpush1.bf16.msra.mxu0 0
          %2047 = vmatprep.subr.bf16.mxu0 0
          %2048 = vmatpush1.bf16.msra.mxu0 0
          %2049 = vmatprep.subr.bf16.mxu0 0
          %2050 = vmatpush1.bf16.msra.mxu0 0
          %2051 = vmatprep.subr.bf16.mxu0 0
          %2052 = vmatpush1.bf16.msra.mxu0 0
          %2053 = vmatprep.subr.bf16.mxu0 0
          %2054 = vmatpush1.bf16.msra.mxu0 0
          %2055 = vmatprep.subr.bf16.mxu0 0
          %2056 = vmatpush1.bf16.msra.mxu0 0
          %2057 = vmatprep.subr.bf16.mxu0 0
          %2058 = vmatpush1.bf16.msra.mxu0 0
          %2059 = vmatprep.subr.bf16.mxu0 0
          %2060 = vmatpush1.bf16.msra.mxu0 0
          %2061 = vmatprep.mubr.bf16.mxu0 0
          %2062 = vmatmul.mubr.bf16.gmra.mrb[0].mxu0 %v2027
          %v2063 = vpop.f32.mrb[0].mxu0
          %v2064 = vadd.f32 0.0, %v2063
          %v2065 = vpop.f32.mrb[0].mxu0
          %v2066 = vpop.f32.mrb[0].mxu0
          %v2067 = vpop.f32.mrb[0].mxu0
          %2068 = vdwg.mxu0
          %v2070 = vunpack.c.l.b16 %v1751
          %v2071 = vunpack.c.h.b16 %v1751
          %2072 = vset.pattern.permute.xlu0 0
          %2073 = vperm.xlu0 %2072, %v2070
          %v2074 = vpop.permute.xlu0 %2073
          %2075 = vset.pattern.permute.xlu0 0
          %2076 = vperm.xlu0 %2075, %v2071
          %v2077 = vpop.permute.xlu0 %2076
          %v2078 = vlaneseq
          %v2079 = vshrl.u32 %v2078, 7
          %v2080 = vsub.s32 %v1213, %v2079
          %v2081 = vrot.slane %v2074, %v2080
          %v2082 = vlaneseq
          %v2083 = vshrl.u32 %v2082, 7
          %v2084 = vsub.s32 %v1218, %v2083
          %v2085 = vrot.slane %v2077, %v2084
          %v2086 = vsel %vm1223, %v2085, %v2081
          %v2087 = vpack.c.b16 %v2086, %v2086
          %v2090 = vsel %vm1303, %v2087, 0
          %2092 = vmatprep.subr.bf16.mxu0 0
          %2093 = vmatpush1.bf16.msra.mxu0 %v604
          %2094 = vmatprep.subr.bf16.mxu0 0
          %2095 = vmatpush1.bf16.msra.mxu0 0
          %2096 = vmatprep.subr.bf16.mxu0 0
          %2097 = vmatpush1.bf16.msra.mxu0 0
          %2098 = vmatprep.subr.bf16.mxu0 0
          %2099 = vmatpush1.bf16.msra.mxu0 0
          %2100 = vmatprep.subr.bf16.mxu0 0
          %2101 = vmatpush1.bf16.msra.mxu0 0
          %2102 = vmatprep.subr.bf16.mxu0 0
          %2103 = vmatpush1.bf16.msra.mxu0 0
          %2104 = vmatprep.subr.bf16.mxu0 0
          %2105 = vmatpush1.bf16.msra.mxu0 0
          %2106 = vmatprep.subr.bf16.mxu0 0
          %2107 = vmatpush1.bf16.msra.mxu0 0
          %2108 = vmatprep.subr.bf16.mxu0 0
          %2109 = vmatpush1.bf16.msra.mxu0 0
          %2110 = vmatprep.subr.bf16.mxu0 0
          %2111 = vmatpush1.bf16.msra.mxu0 0
          %2112 = vmatprep.subr.bf16.mxu0 0
          %2113 = vmatpush1.bf16.msra.mxu0 0
          %2114 = vmatprep.subr.bf16.mxu0 0
          %2115 = vmatpush1.bf16.msra.mxu0 0
          %2116 = vmatprep.subr.bf16.mxu0 0
          %2117 = vmatpush1.bf16.msra.mxu0 0
          %2118 = vmatprep.subr.bf16.mxu0 0
          %2119 = vmatpush1.bf16.msra.mxu0 0
          %2120 = vmatprep.subr.bf16.mxu0 0
          %2121 = vmatpush1.bf16.msra.mxu0 0
          %2122 = vmatprep.subr.bf16.mxu0 0
          %2123 = vmatpush1.bf16.msra.mxu0 0
          %2124 = vmatprep.mubr.bf16.mxu0 0
          %2125 = vmatmul.mubr.bf16.gmra.mrb[0].mxu0 %v2090
          %v2126 = vpop.f32.mrb[0].mxu0
          %v2127 = vadd.f32 0.0, %v2126
          %v2128 = vpop.f32.mrb[0].mxu0
          %v2129 = vpop.f32.mrb[0].mxu0
          %v2130 = vpop.f32.mrb[0].mxu0
          %2131 = vdwg.mxu0
          %v2133 = vunpack.c.l.b16 %v1752
          %v2134 = vunpack.c.h.b16 %v1752
          %2135 = vset.pattern.permute.xlu0 0
          %2136 = vperm.xlu0 %2135, %v2133
          %v2137 = vpop.permute.xlu0 %2136
          %2138 = vset.pattern.permute.xlu0 0
          %2139 = vperm.xlu0 %2138, %v2134
          %v2140 = vpop.permute.xlu0 %2139
          %v2141 = vlaneseq
          %v2142 = vshrl.u32 %v2141, 7
          %v2143 = vsub.s32 %v1213, %v2142
          %v2144 = vrot.slane %v2137, %v2143
          %v2145 = vlaneseq
          %v2146 = vshrl.u32 %v2145, 7
          %v2147 = vsub.s32 %v1218, %v2146
          %v2148 = vrot.slane %v2140, %v2147
          %v2149 = vsel %vm1223, %v2148, %v2144
          %v2150 = vpack.c.b16 %v2149, %v2149
          %v2153 = vsel %vm1303, %v2150, 0
          %2155 = vmatprep.subr.bf16.mxu0 0
          %2156 = vmatpush1.bf16.msra.mxu0 %v605
          %2157 = vmatprep.subr.bf16.mxu0 0
          %2158 = vmatpush1.bf16.msra.mxu0 0
          %2159 = vmatprep.subr.bf16.mxu0 0
          %2160 = vmatpush1.bf16.msra.mxu0 0
          %2161 = vmatprep.subr.bf16.mxu0 0
          %2162 = vmatpush1.bf16.msra.mxu0 0
          %2163 = vmatprep.subr.bf16.mxu0 0
          %2164 = vmatpush1.bf16.msra.mxu0 0
          %2165 = vmatprep.subr.bf16.mxu0 0
          %2166 = vmatpush1.bf16.msra.mxu0 0
          %2167 = vmatprep.subr.bf16.mxu0 0
          %2168 = vmatpush1.bf16.msra.mxu0 0
          %2169 = vmatprep.subr.bf16.mxu0 0
          %2170 = vmatpush1.bf16.msra.mxu0 0
          %2171 = vmatprep.subr.bf16.mxu0 0
          %2172 = vmatpush1.bf16.msra.mxu0 0
          %2173 = vmatprep.subr.bf16.mxu0 0
          %2174 = vmatpush1.bf16.msra.mxu0 0
          %2175 = vmatprep.subr.bf16.mxu0 0
          %2176 = vmatpush1.bf16.msra.mxu0 0
          %2177 = vmatprep.subr.bf16.mxu0 0
          %2178 = vmatpush1.bf16.msra.mxu0 0
          %2179 = vmatprep.subr.bf16.mxu0 0
          %2180 = vmatpush1.bf16.msra.mxu0 0
          %2181 = vmatprep.subr.bf16.mxu0 0
          %2182 = vmatpush1.bf16.msra.mxu0 0
          %2183 = vmatprep.subr.bf16.mxu0 0
          %2184 = vmatpush1.bf16.msra.mxu0 0
          %2185 = vmatprep.subr.bf16.mxu0 0
          %2186 = vmatpush1.bf16.msra.mxu0 0
          %2187 = vmatprep.mubr.bf16.mxu0 0
          %2188 = vmatmul.mubr.bf16.gmra.mrb[0].mxu0 %v2153
          %v2189 = vpop.f32.mrb[0].mxu0
          %v2190 = vadd.f32 0.0, %v2189
          %v2191 = vpop.f32.mrb[0].mxu0
          %v2192 = vpop.f32.mrb[0].mxu0
          %v2193 = vpop.f32.mrb[0].mxu0
          %2194 = vdwg.mxu0
          %v2196 = vunpack.c.l.b16 %v1753
          %v2197 = vunpack.c.h.b16 %v1753
          %2198 = vset.pattern.permute.xlu0 0
          %2199 = vperm.xlu0 %2198, %v2196
          %v2200 = vpop.permute.xlu0 %2199
          %2201 = vset.pattern.permute.xlu0 0
          %2202 = vperm.xlu0 %2201, %v2197
          %v2203 = vpop.permute.xlu0 %2202
          %v2204 = vlaneseq
          %v2205 = vshrl.u32 %v2204, 7
          %v2206 = vsub.s32 %v1213, %v2205
          %v2207 = vrot.slane %v2200, %v2206
          %v2208 = vlaneseq
          %v2209 = vshrl.u32 %v2208, 7
          %v2210 = vsub.s32 %v1218, %v2209
          %v2211 = vrot.slane %v2203, %v2210
          %v2212 = vsel %vm1223, %v2211, %v2207
          %v2213 = vpack.c.b16 %v2212, %v2212
          %v2216 = vsel %vm1303, %v2213, 0
          %2218 = vmatprep.subr.bf16.mxu0 0
          %2219 = vmatpush1.bf16.msra.mxu0 %v606
          %2220 = vmatprep.subr.bf16.mxu0 0
          %2221 = vmatpush1.bf16.msra.mxu0 0
          %2222 = vmatprep.subr.bf16.mxu0 0
          %2223 = vmatpush1.bf16.msra.mxu0 0
          %2224 = vmatprep.subr.bf16.mxu0 0
          %2225 = vmatpush1.bf16.msra.mxu0 0
          %2226 = vmatprep.subr.bf16.mxu0 0
          %2227 = vmatpush1.bf16.msra.mxu0 0
          %2228 = vmatprep.subr.bf16.mxu0 0
          %2229 = vmatpush1.bf16.msra.mxu0 0
          %2230 = vmatprep.subr.bf16.mxu0 0
          %2231 = vmatpush1.bf16.msra.mxu0 0
          %2232 = vmatprep.subr.bf16.mxu0 0
          %2233 = vmatpush1.bf16.msra.mxu0 0
          %2234 = vmatprep.subr.bf16.mxu0 0
          %2235 = vmatpush1.bf16.msra.mxu0 0
          %2236 = vmatprep.subr.bf16.mxu0 0
          %2237 = vmatpush1.bf16.msra.mxu0 0
          %2238 = vmatprep.subr.bf16.mxu0 0
          %2239 = vmatpush1.bf16.msra.mxu0 0
          %2240 = vmatprep.subr.bf16.mxu0 0
          %2241 = vmatpush1.bf16.msra.mxu0 0
          %2242 = vmatprep.subr.bf16.mxu0 0
          %2243 = vmatpush1.bf16.msra.mxu0 0
          %2244 = vmatprep.subr.bf16.mxu0 0
          %2245 = vmatpush1.bf16.msra.mxu0 0
          %2246 = vmatprep.subr.bf16.mxu0 0
          %2247 = vmatpush1.bf16.msra.mxu0 0
          %2248 = vmatprep.subr.bf16.mxu0 0
          %2249 = vmatpush1.bf16.msra.mxu0 0
          %2250 = vmatprep.mubr.bf16.mxu0 0
          %2251 = vmatmul.mubr.bf16.gmra.mrb[0].mxu0 %v2216
          %v2252 = vpop.f32.mrb[0].mxu0
          %v2253 = vadd.f32 0.0, %v2252
          %v2254 = vpop.f32.mrb[0].mxu0
          %v2255 = vpop.f32.mrb[0].mxu0
          %v2256 = vpop.f32.mrb[0].mxu0
          %2257 = vdwg.mxu0
          %v2258 = vpack.c.bf16 %v539, %v539
          %v2259 = vpack.c.bf16 %v1812, %v1812
          %v2260 = vpack.c.bf16 %v1875, %v1875
          %v2261 = vpack.c.bf16 %v1938, %v1938
          %v2262 = vpack.c.bf16 %v2001, %v2001
          %v2263 = vpack.c.bf16 %v2064, %v2064
          %v2264 = vpack.c.bf16 %v2127, %v2127
          %v2265 = vpack.c.bf16 %v2190, %v2190
          %v2266 = vpack.c.bf16 %v2253, %v2253
          %v2275 = vunpack.c.l.b16 %v2259
          %v2276 = vunpack.c.l.b16 %v2260
          %v2277 = vunpack.c.l.b16 %v2261
          %v2278 = vunpack.c.l.b16 %v2262
          %v2279 = vunpack.c.l.b16 %v2263
          %v2280 = vunpack.c.l.b16 %v2264
          %v2281 = vunpack.c.l.b16 %v2265
          %v2282 = vunpack.c.l.b16 %v2266
          %v2283 = vrot.slane %v2276, 7
          %v2284 = vsel %vm1288, %v2283, %v2275
          %v2285 = vrot.slane %v2277, 6
          %v2286 = vsel %vm1290, %v2285, %v2284
          %v2287 = vrot.slane %v2278, 5
          %v2288 = vsel %vm1292, %v2287, %v2286
          %v2289 = vrot.slane %v2279, 4
          %v2290 = vsel %vm1294, %v2289, %v2288
          %v2291 = vrot.slane %v2280, 3
          %v2292 = vsel %vm1296, %v2291, %v2290
          %v2293 = vrot.slane %v2281, 2
          %v2294 = vsel %vm1298, %v2293, %v2292
          %v2295 = vrot.slane %v2282, 1
          %v2296 = vsel %vm1300, %v2295, %v2294
          %v2297 = vpack.c.b16 %v2296, %v2296
          %2298 = vrot.lane.b32.xlu0 %v2297, 16
          %v2299 = vpop.permute.xlu0 %2298
          %2301 = vrot.lane.b32.xlu0 %v558, 80
          %v2302 = vpop.permute.xlu0 %2301
          %v2305 = vsel %vm1303, %v2258, %v2299
          %vm2306 = vcmask 654336
          %v2308 = vsel %vm2306, %v2305, %v2302
          %v2310 = vld [vmem:[%s7] sm:$0xff]
          %v2311 = vld [vmem:[%s7 + $0x8] sm:$0xff]
          %v2312 = vld [vmem:[%s7 + $0x10] sm:$0xff]
          %v2313 = vld [vmem:[%s7 + $0x18] sm:$0xff]
          %v2314 = vld [vmem:[%s7 + $0x20] sm:$0xff]
          %v2315 = vld [vmem:[%s7 + $0x28] sm:$0xff]
          %v2316 = vld [vmem:[%s7 + $0x30] sm:$0xff]
          %v2317 = vld [vmem:[%s7 + $0x38] sm:$0xff]
          %v2318 = vld [vmem:[%s7 + $0x40] sm:$0xff]
          %v2319 = vld [vmem:[%s7 + $0x48] sm:$0xff]
          %v2320 = vld [vmem:[%s7 + $0x50] sm:$0xff]
          %v2321 = vld [vmem:[%s7 + $0x58] sm:$0xff]
          %v2322 = vld [vmem:[%s7 + $0x60] sm:$0xff]
          %v2323 = vld [vmem:[%s7 + $0x68] sm:$0xff]
          %v2324 = vld [vmem:[%s7 + $0x70] sm:$0xff]
          %v2325 = vld [vmem:[%s7 + $0x78] sm:$0xff]
          %v2326 = vld [vmem:[%s7 + $0x80] sm:$0xff]
          %v2327 = vld [vmem:[%s7 + $0x88] sm:$0xff]
          %v2328 = vld [vmem:[%s8] sm:$0x3]
          %v2330 = vlaneseq
          %v2331 = vshrl.u32 %v2330, 7
          %v2332 = vsub.s32 0, %v2331
          %v2333 = vrot.slane %v2328, %v2332
          %v2334 = vlaneseq
          %v2335 = vshrl.u32 %v2334, 7
          %v2336 = vsub.s32 1, %v2335
          %v2337 = vrot.slane %v2328, %v2336
          %v2358 = vunpack.c.l.b16 %v2310
          %v2359 = vunpack.c.h.b16 %v2310
          %v2360 = vunpack.c.l.b16 %v2311
          %v2361 = vunpack.c.h.b16 %v2311
          %v2362 = vunpack.c.l.b16 %v2312
          %v2363 = vunpack.c.h.b16 %v2312
          %v2364 = vunpack.c.l.b16 %v2313
          %v2365 = vunpack.c.h.b16 %v2313
          %v2366 = vunpack.c.l.b16 %v2314
          %v2367 = vunpack.c.h.b16 %v2314
          %v2368 = vunpack.c.l.b16 %v2315
          %v2369 = vunpack.c.h.b16 %v2315
          %v2370 = vunpack.c.l.b16 %v2316
          %v2371 = vunpack.c.h.b16 %v2316
          %v2372 = vunpack.c.l.b16 %v2317
          %v2373 = vunpack.c.h.b16 %v2317
          %v2374 = vunpack.c.l.b16 %v2318
          %v2375 = vunpack.c.h.b16 %v2318
          %v2376 = vunpack.c.l.b16 %v2319
          %v2377 = vunpack.c.h.b16 %v2319
          %v2378 = vunpack.c.l.b16 %v2320
          %v2379 = vunpack.c.h.b16 %v2320
          %v2380 = vunpack.c.l.b16 %v2321
          %v2381 = vunpack.c.h.b16 %v2321
          %v2382 = vunpack.c.l.b16 %v2322
          %v2383 = vunpack.c.h.b16 %v2322
          %v2384 = vunpack.c.l.b16 %v2323
          %v2385 = vunpack.c.h.b16 %v2323
          %v2386 = vunpack.c.l.b16 %v2324
          %v2387 = vunpack.c.h.b16 %v2324
          %v2388 = vunpack.c.l.b16 %v2325
          %v2389 = vunpack.c.h.b16 %v2325
          %v2390 = vunpack.c.l.b16 %v2326
          %v2391 = vunpack.c.h.b16 %v2326
          %v2392 = vunpack.c.l.b16 %v2327
          %v2393 = vunpack.c.h.b16 %v2327
          %v2394 = vpack.c.b16 %v2360, %v2358
          %v2395 = vpack.c.b16 %v2361, %v2359
          %v2396 = vpack.c.b16 %v2364, %v2362
          %v2397 = vpack.c.b16 %v2365, %v2363
          %v2398 = vpack.c.b16 %v2368, %v2366
          %v2399 = vpack.c.b16 %v2369, %v2367
          %v2400 = vpack.c.b16 %v2372, %v2370
          %v2401 = vpack.c.b16 %v2373, %v2371
          %v2402 = vpack.c.b16 %v2376, %v2374
          %v2403 = vpack.c.b16 %v2377, %v2375
          %v2404 = vpack.c.b16 %v2380, %v2378
          %v2405 = vpack.c.b16 %v2381, %v2379
          %v2406 = vpack.c.b16 %v2384, %v2382
          %v2407 = vpack.c.b16 %v2385, %v2383
          %v2408 = vpack.c.b16 %v2388, %v2386
          %v2409 = vpack.c.b16 %v2389, %v2387
          %v2410 = vpack.c.b16 %v2392, %v2390
          %v2411 = vpack.c.b16 %v2393, %v2391
          %v2430 = vsel %vm1303, %v2302, 0
          %2432 = vmatprep.subr.bf16.mxu0 %v2395
          %2433 = vmatpush1.bf16.msra.mxu0 %v2394
          %2434 = vmatprep.subr.bf16.mxu0 %v2397
          %2435 = vmatpush1.bf16.msra.mxu0 %v2396
          %2436 = vmatprep.subr.bf16.mxu0 %v2399
          %2437 = vmatpush1.bf16.msra.mxu0 %v2398
          %2438 = vmatprep.subr.bf16.mxu0 %v2401
          %2439 = vmatpush1.bf16.msra.mxu0 %v2400
          %2440 = vmatprep.subr.bf16.mxu0 %v2403
          %2441 = vmatpush1.bf16.msra.mxu0 %v2402
          %2442 = vmatprep.subr.bf16.mxu0 %v2405
          %2443 = vmatpush1.bf16.msra.mxu0 %v2404
          %2444 = vmatprep.subr.bf16.mxu0 %v2407
          %2445 = vmatpush1.bf16.msra.mxu0 %v2406
          %2446 = vmatprep.subr.bf16.mxu0 %v2409
          %2447 = vmatpush1.bf16.msra.mxu0 %v2408
          %2448 = vmatprep.subr.bf16.mxu0 %v2411
          %2449 = vmatpush1.bf16.msra.mxu0 %v2410
          %2450 = vmatprep.subr.bf16.mxu0 0
          %2451 = vmatpush1.bf16.msra.mxu0 0
          %2452 = vmatprep.subr.bf16.mxu0 0
          %2453 = vmatpush1.bf16.msra.mxu0 0
          %2454 = vmatprep.subr.bf16.mxu0 0
          %2455 = vmatpush1.bf16.msra.mxu0 0
          %2456 = vmatprep.subr.bf16.mxu0 0
          %2457 = vmatpush1.bf16.msra.mxu0 0
          %2458 = vmatprep.subr.bf16.mxu0 0
          %2459 = vmatpush1.bf16.msra.mxu0 0
          %2460 = vmatprep.subr.bf16.mxu0 0
          %2461 = vmatpush1.bf16.msra.mxu0 0
          %2462 = vmatprep.subr.bf16.mxu0 0
          %2463 = vmatpush1.bf16.msra.mxu0 0
          %2464 = vmatprep.mubr.bf16.mxu0 %v2430
          %2465 = vmatmul.mubr.bf16.gmra.mrb[0].mxu0 %v2308
          %v2466 = vpop.f32.mrb[0].mxu0
          %v2467 = vadd.f32 %v2333, %v2466
          %v2468 = vpop.f32.mrb[0].mxu0
          %v2469 = vadd.f32 %v2337, %v2468
          %v2470 = vpop.f32.mrb[0].mxu0
          %v2471 = vpop.f32.mrb[0].mxu0
          %2472 = vdwg.mxu0
          %v2473 = vxor.u32 %v2467, 2147483648
          %v2474 = vmul.f32 %v2473, 1.442695
          %v2475 = vpow.pop %v2474
          %v2476 = vadd.f32 %v2475, 1.0
          %v2477 = vrcp.pop %v2476
          %v2478 = vmul.f32 1.0, %v2477
          %v2479 = vtanh.pop %v2469
          %v2480 = vxor.u32 %v2469, 2147483648
          %v2481 = vmul.f32 %v2480, 1.442695
          %v2482 = vpow.pop %v2481
          %v2483 = vadd.f32 %v2482, 1.0
          %v2484 = vrcp.pop %v2483
          %v2485 = vmul.f32 1.0, %v2484
          %2487 = vrot.lane.b32.xlu0 %v541, 64
          %v2488 = vpop.permute.xlu0 %2487
          %v2490 = vmul.f32 %v2478, %v2488
          %v2491 = vmul.f32 %v2478, %v2479
          %2493 = vrot.lane.b32.xlu0 %v2491, 64
          %v2494 = vpop.permute.xlu0 %2493
          %v2496 = vadd.f32 %v2490, %v2494
          %v2497 = vtanh.pop %v2496
          %v2498 = vmul.f32 %v2485, %v2497
          %2500 = vrot.lane.b32.xlu0 %v2496, 64
          %v2501 = vpop.permute.xlu0 %2500
          %2503 = vst.msk [vmem:[#allocation14] sm:$0xff] %vm631, %v2501
          %2505 = vrot.lane.b32.xlu0 %v2498, 64
          %v2506 = vpop.permute.xlu0 %2505
          %2508 = vst.msk [vmem:[#allocation12] sm:$0xff] %vm631, %v2506
          %v2509 = vpack.c.bf16 %v2498, %v2498
          %v2511 = vunpack.c.l.b16 %v2509
          %v2512 = vpack.c.b16 %v2511, %v2511
          %2513 = vrot.lane.b32.xlu0 %v2512, 64
          %v2514 = vpop.permute.xlu0 %2513
          %vm2516 = vcmask 519168
          %2517 = vst.msk [vmem:[#allocation2] sm:$0xf] %vm2516, %v2514
        $region84: #{tpu_custom_call.1} parent=63 // pred_fallthru
          _
        %v2518 = vld [vmem:[#allocation2] sm:$0xf]
        %v2519 = vld [vmem:[%s483] sm:$0xf]
        %v2520 = vld [vmem:[%s483 + $0x4] sm:$0xf]
        %v2521 = vld [vmem:[%s483 + $0x8] sm:$0xf]
        %v2522 = vld [vmem:[%s483 + $0xc] sm:$0xf]
        %v2523 = vld [vmem:[%s483 + $0x10] sm:$0xf]
        %v2524 = vld [vmem:[%s483 + $0x14] sm:$0xf]
        %v2525 = vld [vmem:[%s483 + $0x18] sm:$0xf]
        %v2526 = vld [vmem:[%s483 + $0x1c] sm:$0xf]
        %v2527 = vld [vmem:[%s533] sm:$0x1]
        %v2529 = vlaneseq
        %v2530 = vshrl.u32 %v2529, 7
        %v2531 = vsub.s32 0, %v2530
        %v2532 = vrot.slane %v2527, %v2531
        %v2542 = vunpack.c.l.b16 %v2519
        %v2543 = vunpack.c.l.b16 %v2520
        %v2544 = vunpack.c.l.b16 %v2521
        %v2545 = vunpack.c.l.b16 %v2522
        %v2546 = vunpack.c.l.b16 %v2523
        %v2547 = vunpack.c.l.b16 %v2524
        %v2548 = vunpack.c.l.b16 %v2525
        %v2549 = vunpack.c.l.b16 %v2526
        %v2550 = vpack.c.b16 %v2543, %v2542
        %v2551 = vpack.c.b16 %v2545, %v2544
        %v2552 = vpack.c.b16 %v2547, %v2546
        %v2553 = vpack.c.b16 %v2549, %v2548
        %vm2558 = vcmask 523264
        %v2560 = vsel %vm2558, %v2518, 0
        %2562 = vmatprep.subr.bf16.mxu0 0
        %2563 = vmatpush1.bf16.msra.mxu0 %v2550
        %2564 = vmatprep.subr.bf16.mxu0 0
        %2565 = vmatpush1.bf16.msra.mxu0 %v2551
        %2566 = vmatprep.subr.bf16.mxu0 0
        %2567 = vmatpush1.bf16.msra.mxu0 %v2552
        %2568 = vmatprep.subr.bf16.mxu0 0
        %2569 = vmatpush1.bf16.msra.mxu0 %v2553
        %2570 = vmatprep.subr.bf16.mxu0 0
        %2571 = vmatpush1.bf16.msra.mxu0 0
        %2572 = vmatprep.subr.bf16.mxu0 0
        %2573 = vmatpush1.bf16.msra.mxu0 0
        %2574 = vmatprep.subr.bf16.mxu0 0
        %2575 = vmatpush1.bf16.msra.mxu0 0
        %2576 = vmatprep.subr.bf16.mxu0 0
        %2577 = vmatpush1.bf16.msra.mxu0 0
        %2578 = vmatprep.subr.bf16.mxu0 0
        %2579 = vmatpush1.bf16.msra.mxu0 0
        %2580 = vmatprep.subr.bf16.mxu0 0
        %2581 = vmatpush1.bf16.msra.mxu0 0
        %2582 = vmatprep.subr.bf16.mxu0 0
        %2583 = vmatpush1.bf16.msra.mxu0 0
        %2584 = vmatprep.subr.bf16.mxu0 0
        %2585 = vmatpush1.bf16.msra.mxu0 0
        %2586 = vmatprep.subr.bf16.mxu0 0
        %2587 = vmatpush1.bf16.msra.mxu0 0
        %2588 = vmatprep.subr.bf16.mxu0 0
        %2589 = vmatpush1.bf16.msra.mxu0 0
        %2590 = vmatprep.subr.bf16.mxu0 0
        %2591 = vmatpush1.bf16.msra.mxu0 0
        %2592 = vmatprep.subr.bf16.mxu0 0
        %2593 = vmatpush1.bf16.msra.mxu0 0
        %2594 = vmatprep.mubr.bf16.mxu0 0
        %2595 = vmatmul.mubr.bf16.gmra.mrb[0].mxu0 %v2560
        %v2596 = vpop.f32.mrb[0].mxu0
        %v2597 = vadd.f32 %v2532, %v2596
        %v2598 = vpop.f32.mrb[0].mxu0
        %v2599 = vpop.f32.mrb[0].mxu0
        %v2600 = vpop.f32.mrb[0].mxu0
        %2601 = vdwg.mxu0
        %2602 = vst [vmem:[%s524] sm:$0xff] %v2597
        %s2603 = sand.u32 %s285, 1
        %s2604 = scalar_lea.sflag [#allocation5], %s2603
        %s2605 = sand.u32 %s285, 1
        %s2606 = smul.addr %s2605, 8
        %s2607 = scalar_lea.vmem [#allocation11], %s2606
        // Predicated region
        $region85: #{tpu_custom_call.1} parent=63 // pred_check
          %p2608 = pneg %p295
        $region86: #{tpu_custom_call.1} parent=63 // pred_check_branch
          %2610 = sbr.rel (%p2608) target = $region88
        $region87: #{tpu_custom_call.1} parent=63 // pred_region
          %s2612 = ssub.s32 128, 128
          %2613 = vsyncadd %s2604, %s2612
          %s2614 = smul.addr %s36, 128
          %s2615 = scalar_lea.hbm %s11, %s2614
          %s2617 = sshll.u32 %s2607, 4
          %s2618 = int_to_ptr.vmem [resolvable:$true] %s2617
          %2620 = dma.vmem_to_hbm [thread:$0]  %s2618, 128, %s2615, %s2604
        $region88: #{tpu_custom_call.1} parent=63 // pred_fallthru
          _
        // Predicated region
        $region89: #{tpu_custom_call.1} parent=63 // pred_check
          %p2621 = pneg %p316
        $region90: #{tpu_custom_call.1} parent=63 // pred_check_branch
          %2623 = sbr.rel (%p2621) target = $region92
        $region91: #{tpu_custom_call.1} parent=63 // pred_region
          %s2625 = ssub.s32 128, 128
          %2626 = vsyncadd [#allocation13], %s2625
          %s2628 = sshll.u32 [#allocation12], 4
          %s2629 = int_to_ptr.vmem [resolvable:$true] %s2628
          %2631 = dma.vmem_to_hbm [thread:$0]  %s2629, 128, %s12, [#allocation13]
        $region92: #{tpu_custom_call.1} parent=63 // pred_fallthru
          _
        // Predicated region
        $region93: #{tpu_custom_call.1} parent=63 // pred_check
          %p2632 = pneg %p337
        $region94: #{tpu_custom_call.1} parent=63 // pred_check_branch
          %2634 = sbr.rel (%p2632) target = $region96
        $region95: #{tpu_custom_call.1} parent=63 // pred_region
          %s2636 = ssub.s32 128, 128
          %2637 = vsyncadd [#allocation13], %s2636
          %s2639 = sshll.u32 [#allocation14], 4
          %s2640 = int_to_ptr.vmem [resolvable:$true] %s2639
          %2642 = dma.vmem_to_hbm [thread:$0]  %s2640, 128, %s13, [#allocation13]
        $region96: #{tpu_custom_call.1} parent=63 // pred_fallthru
          _
        // Predicated region
        $region97: #{tpu_custom_call.1} parent=63 // pred_check
          %p2643 = pneg %p358
        $region98: #{tpu_custom_call.1} parent=63 // pred_check_branch
          %2645 = sbr.rel (%p2643) target = $region100
        $region99: #{tpu_custom_call.1} parent=63 // pred_region
          %s2647 = ssub.s32 128, 128
          %2648 = vsyncadd [#allocation16], %s2647
          %s2650 = sshll.u32 [#allocation15], 4
          %s2651 = int_to_ptr.vmem [resolvable:$true] %s2650
          %2653 = dma.vmem_to_hbm [thread:$0]  %s2651, 128, %s14, [#allocation16]
        $region100: #{tpu_custom_call.1} parent=63 // pred_fallthru
          _
        // Predicated region
        $region101: #{tpu_custom_call.1} parent=63 // pred_check
          %p2654 = pneg %p316
        $region102: #{tpu_custom_call.1} parent=63 // pred_check_branch
          %2656 = sbr.rel (%p2654) target = $region104
        $region103: #{tpu_custom_call.1} parent=63 // pred_region
          %2657 = dma.done [#allocation13], 128
        $region104: #{tpu_custom_call.1} parent=63 // pred_fallthru
          _
        // Predicated region
        $region105: #{tpu_custom_call.1} parent=63 // pred_check
          %p2658 = pneg %p337
        $region106: #{tpu_custom_call.1} parent=63 // pred_check_branch
          %2660 = sbr.rel (%p2658) target = $region108
        $region107: #{tpu_custom_call.1} parent=63 // pred_region
          %2661 = dma.done [#allocation13], 128
        $region108: #{tpu_custom_call.1} parent=63 // pred_fallthru
          _
        // Predicated region
        $region109: #{tpu_custom_call.1} parent=63 // pred_check
          %p2662 = pneg %p358
        $region110: #{tpu_custom_call.1} parent=63 // pred_check_branch
          %2664 = sbr.rel (%p2662) target = $region112
        $region111: #{tpu_custom_call.1} parent=63 // pred_region
          %2665 = dma.done [#allocation16], 128
        $region112: #{tpu_custom_call.1} parent=63 // pred_fallthru
          _
      $region64: #{tpu_custom_call.1} parent=5 // pred_fallthru
        _
      %p2666 = scmp.le.s32.totalorder 2, %s31
      // Predicated region
      $region113: #{tpu_custom_call.1} parent=5 // pred_check
        %p2667 = pneg %p2666
      $region114: #{tpu_custom_call.1} parent=5 // pred_check_branch
        %2669 = sbr.rel (%p2667) target = $region116
      $region115: #{tpu_custom_call.1} parent=5 // pred_region
        %s2670 = ssub.s32 %s31, 2
        // Predicated region
        $region117: #{tpu_custom_call.1} parent=115 // pred_check
          %p2671 = pneg %p301
        $region118: #{tpu_custom_call.1} parent=115 // pred_check_branch
          %2673 = sbr.rel (%p2671) target = $region120
        $region119: #{tpu_custom_call.1} parent=115 // pred_region
          %s2674 = sand.u32 %s286, 1
          %s2675 = scalar_lea.sflag [#allocation5], %s2674
          %s2676 = sand.u32 %s286, 1
          %s2677 = smul.addr %s2676, 8
          %s2678 = scalar_lea.vmem [#allocation11], %s2677
          %2679 = dma.done %s2675, 128
        $region120: #{tpu_custom_call.1} parent=115 // pred_fallthru
          _
      $region116: #{tpu_custom_call.1} parent=5 // pred_fallthru
        _
    $region6: #{tpu_custom_call.1} parent=1 // loop_footer
      %s35 = sadd.s32 1, %s31
    $region7: #{tpu_custom_call.1} parent=1 // loop_footer_branch
      %30 = sbr.rel target = $region3
    $region8: #{tpu_custom_call.1} parent=1 // loop_exit
      _
    %2680 = vsyncpa [#allocation4], 1
    %s2681 = scalar_lea.sflag [#allocation4], 1
    %2682 = vsyncpa %s2681, 1
    %2683 = vsyncpa [#allocation7], 1
    %2684 = vsyncpa [#allocation10], 1
    %s2685 = scalar_lea.sflag [#allocation10], 1
    %2686 = vsyncpa %s2685, 1
    %2687 = vsyncpa [#allocation5], 1
    %s2688 = scalar_lea.sflag [#allocation5], 1
    %2689 = vsyncpa %s2688, 1
    %2690 = vsyncpa [#allocation13], 1
    %2691 = vsyncpa [#allocation16], 1

</llo_original>
